<compile_context>
chip_gen: v7x
topology: tpu7x:2x2x1
jax: 0.10.0
libtpu: 0.0.40
codegen_flags: <defaults>
</compile_context>

<pallas_src>
import math

import jax
import jax.numpy as jnp
import numpy as np
from jax.experimental import pallas as pl
from jax.experimental.pallas import tpu as pltpu


# ----------------------------- Pallas kernel --------------------------------
def _kernel(x_ref, mfb_ref,
            w1_ref, b1_ref, w2_ref, b2_ref, w3_ref, b3_ref,
            out_ref, acc_ref):
    fb = pl.program_id(1)
    f_blk = x_ref.shape[1]
    ncomb = x_ref.shape[2]
    T = x_ref.shape[3]
    ntaps = w1_ref.shape[-1] // ncomb            # tap width w (static)
    pad = (ntaps - 1) // 2

    @pl.when(fb == 0)
    def _():
        acc_ref[...] = jnp.zeros_like(acc_ref)

    # Per-shift time-validity masks, built once and reused by every layer.
    cols = jax.lax.broadcasted_iota(jnp.int32, (1, 1, T), 2)
    masks = {}
    for tau in range(ntaps):
        s = tau - pad
        if s != 0:
            masks[s] = jnp.logical_and(cols + s >= 0, cols + s < T)

    def stack_taps(a):
        # a: (f_blk, C, T) f32 -> (f_blk, w*C, T) bf16 where row (tau*C + c)
        # holds a[:, c, t + tau - pad] (zero outside [0, T)).
        parts = []
        for tau in range(ntaps):
            s = tau - pad
            if s == 0:
                parts.append(a)
            else:
                rolled = pltpu.roll(a, shift=(-s) % T, axis=2)
                parts.append(jnp.where(masks[s], rolled, 0.0))
        return jnp.concatenate(parts, axis=1).astype(jnp.bfloat16)

    def layer(a, w_ref, b_ref):
        # One fused matmul per layer: conv taps folded into the K axis.
        xs = stack_taps(a)                       # (f_blk, w*Cin, T)    bf16
        h = jnp.einsum('fhk,fkt->fht', w_ref[...], xs,
                       preferred_element_type=jnp.float32)
        return h + b_ref[...][..., None]         # bias (f_blk, Hout) -> bcast T

    x = x_ref[0]                                 # (f_blk, nComb, T) f32
    h1 = jnp.maximum(layer(x,  w1_ref, b1_ref), 0.0)
    h2 = jnp.maximum(layer(h1, w2_ref, b2_ref), 0.0)
    h3 = layer(h2, w3_ref, b3_ref)               # (f_blk, nCH, T)

    # Partial W_mel = W.sum(freq) over this frequency block (cheap vreg adds:
    # f is the outer axis).
    acc_ref[...] += jnp.sum(h3, axis=0)

    @pl.when(fb == pl.num_programs(1) - 1)
    def _():
        mfb = mfb_ref[0]                         # (nCH, T)
        lmfb = jnp.log(1.0 + mfb * acc_ref[...])
        out_ref[0] = jnp.sum(lmfb, axis=0, keepdims=True)


# ------------------------------ JAX wrapper ----------------------------------
def lineartomel_real_single(mag, mfb, params, *, f_blk=8):
    """mag: (B, nFreqs, nComb, T) f32, mfb: (B, nCH, T) f32 -> lmfb: (B, T)."""
    w1, b1, w2, b2, w3, b3 = params
    B, F, nComb, T = mag.shape
    nCH = w3.shape[1]
    w = w1.shape[-1]
    assert w % 2 == 1, "even tap width needs the torch padding convention checked"
    f_blk = min(f_blk, F)
    assert F % f_blk == 0, "nFreqs must be divisible by the frequency block size"
    assert f_blk % 8 == 0 or f_blk == F, "bias block needs sublane-aligned f_blk"
    nfb = F // f_blk

    def pack(W):
        # (F, Hout, Cin, w) -> (F, Hout, w*Cin) with k = tau*Cin + c; bf16
        # matmul operands (f32 accumulation happens in the kernel).
        Fq, Hout, Cin, wt = W.shape
        return (jnp.transpose(W, (0, 1, 3, 2))
                .reshape(Fq, Hout, wt * Cin).astype(jnp.bfloat16))

    w1p, w2p, w3p = pack(w1), pack(w2), pack(w3)

    def wspec(Wp):   # streamed per-frequency-block weight tile
        _, Hout, K = Wp.shape
        return pl.BlockSpec((f_blk, Hout, K), lambda b, fb: (fb, 0, 0))

    def bspec(bv):   # streamed per-frequency-block bias tile
        Hout = bv.shape[1]
        return pl.BlockSpec((f_blk, Hout), lambda b, fb: (fb, 0))

    out = pl.pallas_call(
        _kernel,
        out_shape=jax.ShapeDtypeStruct((B, 1, T), jnp.float32),
        grid_spec=pltpu.PrefetchScalarGridSpec(
            num_scalar_prefetch=0,
            grid=(B, nfb),                      # freq-block axis is the reduction
            in_specs=[
                pl.BlockSpec((1, f_blk, nComb, T), lambda b, fb: (b, fb, 0, 0)),
                pl.BlockSpec((1, nCH, T), lambda b, fb: (b, 0, 0)),
                wspec(w1p), bspec(b1),
                wspec(w2p), bspec(b2),
                wspec(w3p), bspec(b3),
            ],
            out_specs=pl.BlockSpec((1, 1, T), lambda b, fb: (b, 0, 0)),
            scratch_shapes=[pltpu.VMEM((nCH, T), jnp.float32)],
        ),
        compiler_params=pltpu.CompilerParams(
            dimension_semantics=("parallel", "arbitrary")),
    )(mag, mfb, w1p, b1, w2p, b2, w3p, b3)
    return out[:, 0, :]


# --------------------------- pure-JAX reference -------------------------------
def _ref_dwconv(x, W, b):
    # x: (B, F, Cin, T), W: (F, Hout, Cin, w), b: (F, Hout) -> (B, F, Hout, T)
    w = W.shape[-1]
    T = x.shape[-1]
    pad = (w - 1) // 2
    xp = jnp.pad(x, ((0, 0), (0, 0), (0, 0), (pad, pad)))
    out = 0.0
    for tau in range(w):
        out = out + jnp.einsum('fhc,bfct->bfht', W[..., tau], xp[..., tau:tau + T])
    return out + b[None, :, :, None]


def reference_forward(mag, mfb, params):
    w1, b1, w2, b2, w3, b3 = params
    h1 = jnp.maximum(_ref_dwconv(mag, w1, b1), 0.0)
    h2 = jnp.maximum(_ref_dwconv(h1, w2, b2), 0.0)
    Wt = _ref_dwconv(h2, w3, b3)                # (B, F, nCH, T)
    W_mel = Wt.sum(1)                           # (B, nCH, T)
    return jnp.log(1.0 + mfb * W_mel).sum(1)    # (B, T)


# ---------------------------------- main --------------------------------------
if __name__ == "__main__":
    # nFreqs freq bins, nCH mics, H hidden filters per freq, tap width w, T frames.
    B, nFreqs, nCH, H, w, T = 2, 16, 4, 8, 3, 128
    nComb = nCH + (nCH * (nCH - 1)) // 2        # magnitudes + phase differences

    # TODO(synk): BN branch (RealSeqDepthWise(BatchNorm2d)), tanh non-linearity,
    # use_pad=False and the L==2 variant are not instantiated here
    # (module config: L=3, non_linear='relu', use_pad=True, BN=False).

    key = jax.random.PRNGKey(0)
    ks = jax.random.split(key, 8)

    def uinit(k, shape, fan_in):
        bound = 1.0 / math.sqrt(fan_in)
        return jax.random.uniform(k, shape, jnp.float32, -bound, bound)

    fan1, fan23 = nComb * w, H * w
    params = (
        uinit(ks[0], (nFreqs, H, nComb, w), fan1), uinit(ks[1], (nFreqs, H), fan1),
        uinit(ks[2], (nFreqs, H, H, w), fan23),    uinit(ks[3], (nFreqs, H), fan23),
        uinit(ks[4], (nFreqs, nCH, H, w), fan23),  uinit(ks[5], (nFreqs, nCH), fan23),
    )
    mag = jax.random.normal(ks[6], (B, nFreqs, nComb, T), jnp.float32)
    mfb = 0.1 * jax.random.uniform(ks[7], (B, nCH, T), jnp.float32)

    out = jax.block_until_ready(lineartomel_real_single(mag, mfb, params, f_blk=8))
    ref = jax.block_until_ready(reference_forward(mag, mfb, params))

    assert out.shape == (B, T), out.shape
    np.testing.assert_allclose(np.asarray(out), np.asarray(ref),
                               rtol=2e-2, atol=2e-2)
    print("KERNEL_OK")
</pallas_src>

<mosaic_0001>
module attributes {stable_mosaic.version = 11 : i64} {
  func.func @_kernel(%arg0: i32, %arg1: i32, %arg2: memref<1x8x10x128xf32, #tpu.memory_space<vmem>>, %arg3: memref<1x4x128xf32, #tpu.memory_space<vmem>>, %arg4: memref<8x8x30xbf16, #tpu.memory_space<vmem>>, %arg5: memref<8x8xf32, #tpu.memory_space<vmem>>, %arg6: memref<8x8x24xbf16, #tpu.memory_space<vmem>>, %arg7: memref<8x8xf32, #tpu.memory_space<vmem>>, %arg8: memref<8x4x24xbf16, #tpu.memory_space<vmem>>, %arg9: memref<8x4xf32, #tpu.memory_space<vmem>>, %arg10: memref<1x1x128xf32, #tpu.memory_space<vmem>>, %arg11: memref<4x128xf32, #tpu.memory_space<vmem>>) attributes {dimension_semantics = [#tpu.dimension_semantics<parallel>, #tpu.dimension_semantics<arbitrary>], iteration_bounds = array<i64: 2, 2>, scalar_prefetch = 0 : i64, scratch_operands = 1 : i64, tpu.core_type = #tpu.core_type<tc>, window_params = [{transform_indices = @transform_0, window_bounds = array<i64: 1, 8, 10, 128>}, {transform_indices = @transform_1, window_bounds = array<i64: 1, 4, 128>}, {transform_indices = @transform_2, window_bounds = array<i64: 8, 8, 30>}, {transform_indices = @transform_3, window_bounds = array<i64: 8, 8>}, {transform_indices = @transform_4, window_bounds = array<i64: 8, 8, 24>}, {transform_indices = @transform_5, window_bounds = array<i64: 8, 8>}, {transform_indices = @transform_6, window_bounds = array<i64: 8, 4, 24>}, {transform_indices = @transform_7, window_bounds = array<i64: 8, 4>}, {transform_indices = @transform_8, window_bounds = array<i64: 1, 1, 128>}]} {
    %c0_i32 = arith.constant 0 : i32
    %0 = arith.cmpi eq, %arg1, %c0_i32 : i32
    %1 = arith.extui %0 : i1 to i32
    %c0_i32_0 = arith.constant 0 : i32
    %2 = arith.cmpi ne, %1, %c0_i32_0 : i32
    scf.if %2 {
      %cst_46 = arith.constant 0.000000e+00 : f32
      %89 = vector.broadcast %cst_46 : f32 to vector<4x128xf32>
      %c0_47 = arith.constant 0 : index
      %c0_48 = arith.constant 0 : index
      %90 = vector.load %arg11[%c0_47, %c0_48] : memref<4x128xf32, #tpu.memory_space<vmem>>, vector<4x128xf32>
      tpu.vector_store %arg11[%c0_47, %c0_48], %89 {strides = array<i32>} : memref<4x128xf32, #tpu.memory_space<vmem>>, vector<4x128xf32>,
    } else {
    }
    %3 = tpu.iota {dimensions = array<i32: 2>} : vector<1x1x128xi32>
    %c-1_i32 = arith.constant -1 : i32
    %4 = vector.broadcast %c-1_i32 : i32 to vector<1x1x128xi32>
    %5 = arith.addi %3, %4 : vector<1x1x128xi32>
    %c0_i32_1 = arith.constant 0 : i32
    %6 = vector.broadcast %c0_i32_1 : i32 to vector<1x1x128xi32>
    %7 = arith.cmpi sge, %5, %6 : vector<1x1x128xi32>
    %c-1_i32_2 = arith.constant -1 : i32
    %8 = vector.broadcast %c-1_i32_2 : i32 to vector<1x1x128xi32>
    %9 = arith.addi %3, %8 : vector<1x1x128xi32>
    %c128_i32 = arith.constant 128 : i32
    %10 = vector.broadcast %c128_i32 : i32 to vector<1x1x128xi32>
    %11 = arith.cmpi slt, %9, %10 : vector<1x1x128xi32>
    %12 = arith.andi %7, %11 : vector<1x1x128xi1>
    %c1_i32 = arith.constant 1 : i32
    %13 = vector.broadcast %c1_i32 : i32 to vector<1x1x128xi32>
    %14 = arith.addi %3, %13 : vector<1x1x128xi32>
    %c0_i32_3 = arith.constant 0 : i32
    %15 = vector.broadcast %c0_i32_3 : i32 to vector<1x1x128xi32>
    %16 = arith.cmpi sge, %14, %15 : vector<1x1x128xi32>
    %c1_i32_4 = arith.constant 1 : i32
    %17 = vector.broadcast %c1_i32_4 : i32 to vector<1x1x128xi32>
    %18 = arith.addi %3, %17 : vector<1x1x128xi32>
    %c128_i32_5 = arith.constant 128 : i32
    %19 = vector.broadcast %c128_i32_5 : i32 to vector<1x1x128xi32>
    %20 = arith.cmpi slt, %18, %19 : vector<1x1x128xi32>
    %21 = arith.andi %16, %20 : vector<1x1x128xi1>
    %c0 = arith.constant 0 : index
    %c0_6 = arith.constant 0 : index
    %c0_7 = arith.constant 0 : index
    %c0_8 = arith.constant 0 : index
    %22 = vector.load %arg2[%c0, %c0_6, %c0_7, %c0_8] : memref<1x8x10x128xf32, #tpu.memory_space<vmem>>, vector<1x8x10x128xf32>
    %23 = vector.shape_cast %22 : vector<1x8x10x128xf32> to vector<8x10x128xf32>
    %c1_i32_9 = arith.constant 1 : i32
    %24 = tpu.dynamic_rotate %23 by %c1_i32_9 dim 2 : vector<8x10x128xf32>, i32 -> vector<8x10x128xf32>
    %cst = arith.constant 0.000000e+00 : f32
    %25 = vector.shape_cast %12 : vector<1x1x128xi1> to vector<1x1x128xi1>
    %26 = vector.broadcast %25 : vector<1x1x128xi1> to vector<8x10x128xi1>
    %27 = vector.broadcast %cst : f32 to vector<8x10x128xf32>
    %28 = arith.select %26, %24, %27 : vector<8x10x128xi1>, vector<8x10x128xf32>
    %c127_i32 = arith.constant 127 : i32
    %29 = tpu.dynamic_rotate %23 by %c127_i32 dim 2 : vector<8x10x128xf32>, i32 -> vector<8x10x128xf32>
    %cst_10 = arith.constant 0.000000e+00 : f32
    %30 = vector.shape_cast %21 : vector<1x1x128xi1> to vector<1x1x128xi1>
    %31 = vector.broadcast %30 : vector<1x1x128xi1> to vector<8x10x128xi1>
    %32 = vector.broadcast %cst_10 : f32 to vector<8x10x128xf32>
    %33 = arith.select %31, %29, %32 : vector<8x10x128xi1>, vector<8x10x128xf32>
    %34 = tpu.concatenate %28, %23, %33 in 1 : vector<8x10x128xf32>, vector<8x10x128xf32>, vector<8x10x128xf32> -> vector<8x30x128xf32>
    %35 = arith.truncf %34 : vector<8x30x128xf32> to vector<8x30x128xbf16>
    %c0_11 = arith.constant 0 : index
    %c0_12 = arith.constant 0 : index
    %c0_13 = arith.constant 0 : index
    %36 = vector.load %arg4[%c0_11, %c0_12, %c0_13] : memref<8x8x30xbf16, #tpu.memory_space<vmem>>, vector<8x8x30xbf16>
    "tpu.trace_start"() <{level = 10 : i32, message = "fhk,fkt->fht"}> : () -> ()
    %cst_14 = arith.constant dense<0.000000e+00> : vector<8x8x128xf32>
    %37 = tpu.matmul %36, %35, %cst_14 {dimension_numbers = #tpu.dot_dimension_numbers<[2], [1], [1], [2], [0, 0, 0, 1, 1, 2], [0], [0]>} : vector<8x8x30xbf16>, vector<8x30x128xbf16>, vector<8x8x128xf32> -> vector<8x8x128xf32>
    "tpu.trace_stop"() : () -> ()
    %c0_15 = arith.constant 0 : index
    %c0_16 = arith.constant 0 : index
    %38 = vector.load %arg5[%c0_15, %c0_16] : memref<8x8xf32, #tpu.memory_space<vmem>>, vector<8x8xf32>
    %39 = vector.shape_cast %38 : vector<8x8xf32> to vector<8x8x1xf32>
    %40 = vector.broadcast %39 : vector<8x8x1xf32> to vector<8x8x128xf32>
    %41 = arith.addf %37, %40 : vector<8x8x128xf32>
    %cst_17 = arith.constant 0.000000e+00 : f32
    %42 = vector.broadcast %cst_17 : f32 to vector<8x8x128xf32>
    %43 = arith.maximumf %41, %42 : vector<8x8x128xf32>
    %c1_i32_18 = arith.constant 1 : i32
    %44 = tpu.dynamic_rotate %43 by %c1_i32_18 dim 2 : vector<8x8x128xf32>, i32 -> vector<8x8x128xf32>
    %cst_19 = arith.constant 0.000000e+00 : f32
    %45 = vector.shape_cast %12 : vector<1x1x128xi1> to vector<1x1x128xi1>
    %46 = vector.broadcast %45 : vector<1x1x128xi1> to vector<8x8x128xi1>
    %47 = vector.broadcast %cst_19 : f32 to vector<8x8x128xf32>
    %48 = arith.select %46, %44, %47 : vector<8x8x128xi1>, vector<8x8x128xf32>
    %c127_i32_20 = arith.constant 127 : i32
    %49 = tpu.dynamic_rotate %43 by %c127_i32_20 dim 2 : vector<8x8x128xf32>, i32 -> vector<8x8x128xf32>
    %cst_21 = arith.constant 0.000000e+00 : f32
    %50 = vector.shape_cast %21 : vector<1x1x128xi1> to vector<1x1x128xi1>
    %51 = vector.broadcast %50 : vector<1x1x128xi1> to vector<8x8x128xi1>
    %52 = vector.broadcast %cst_21 : f32 to vector<8x8x128xf32>
    %53 = arith.select %51, %49, %52 : vector<8x8x128xi1>, vector<8x8x128xf32>
    %54 = tpu.concatenate %48, %43, %53 in 1 : vector<8x8x128xf32>, vector<8x8x128xf32>, vector<8x8x128xf32> -> vector<8x24x128xf32>
    %55 = arith.truncf %54 : vector<8x24x128xf32> to vector<8x24x128xbf16>
    %c0_22 = arith.constant 0 : index
    %c0_23 = arith.constant 0 : index
    %c0_24 = arith.constant 0 : index
    %56 = vector.load %arg6[%c0_22, %c0_23, %c0_24] : memref<8x8x24xbf16, #tpu.memory_space<vmem>>, vector<8x8x24xbf16>
    "tpu.trace_start"() <{level = 10 : i32, message = "fhk,fkt->fht"}> : () -> ()
    %cst_25 = arith.constant dense<0.000000e+00> : vector<8x8x128xf32>
    %57 = tpu.matmul %56, %55, %cst_25 {dimension_numbers = #tpu.dot_dimension_numbers<[2], [1], [1], [2], [0, 0, 0, 1, 1, 2], [0], [0]>} : vector<8x8x24xbf16>, vector<8x24x128xbf16>, vector<8x8x128xf32> -> vector<8x8x128xf32>
    "tpu.trace_stop"() : () -> ()
    %c0_26 = arith.constant 0 : index
    %c0_27 = arith.constant 0 : index
    %58 = vector.load %arg7[%c0_26, %c0_27] : memref<8x8xf32, #tpu.memory_space<vmem>>, vector<8x8xf32>
    %59 = vector.shape_cast %58 : vector<8x8xf32> to vector<8x8x1xf32>
    %60 = vector.broadcast %59 : vector<8x8x1xf32> to vector<8x8x128xf32>
    %61 = arith.addf %57, %60 : vector<8x8x128xf32>
    %cst_28 = arith.constant 0.000000e+00 : f32
    %62 = vector.broadcast %cst_28 : f32 to vector<8x8x128xf32>
    %63 = arith.maximumf %61, %62 : vector<8x8x128xf32>
    %c1_i32_29 = arith.constant 1 : i32
    %64 = tpu.dynamic_rotate %63 by %c1_i32_29 dim 2 : vector<8x8x128xf32>, i32 -> vector<8x8x128xf32>
    %cst_30 = arith.constant 0.000000e+00 : f32
    %65 = vector.shape_cast %12 : vector<1x1x128xi1> to vector<1x1x128xi1>
    %66 = vector.broadcast %65 : vector<1x1x128xi1> to vector<8x8x128xi1>
    %67 = vector.broadcast %cst_30 : f32 to vector<8x8x128xf32>
    %68 = arith.select %66, %64, %67 : vector<8x8x128xi1>, vector<8x8x128xf32>
    %c127_i32_31 = arith.constant 127 : i32
    %69 = tpu.dynamic_rotate %63 by %c127_i32_31 dim 2 : vector<8x8x128xf32>, i32 -> vector<8x8x128xf32>
    %cst_32 = arith.constant 0.000000e+00 : f32
    %70 = vector.shape_cast %21 : vector<1x1x128xi1> to vector<1x1x128xi1>
    %71 = vector.broadcast %70 : vector<1x1x128xi1> to vector<8x8x128xi1>
    %72 = vector.broadcast %cst_32 : f32 to vector<8x8x128xf32>
    %73 = arith.select %71, %69, %72 : vector<8x8x128xi1>, vector<8x8x128xf32>
    %74 = tpu.concatenate %68, %63, %73 in 1 : vector<8x8x128xf32>, vector<8x8x128xf32>, vector<8x8x128xf32> -> vector<8x24x128xf32>
    %75 = arith.truncf %74 : vector<8x24x128xf32> to vector<8x24x128xbf16>
    %c0_33 = arith.constant 0 : index
    %c0_34 = arith.constant 0 : index
    %c0_35 = arith.constant 0 : index
    %76 = vector.load %arg8[%c0_33, %c0_34, %c0_35] : memref<8x4x24xbf16, #tpu.memory_space<vmem>>, vector<8x4x24xbf16>
    "tpu.trace_start"() <{level = 10 : i32, message = "fhk,fkt->fht"}> : () -> ()
    %cst_36 = arith.constant dense<0.000000e+00> : vector<8x4x128xf32>
    %77 = tpu.matmul %76, %75, %cst_36 {dimension_numbers = #tpu.dot_dimension_numbers<[2], [1], [1], [2], [0, 0, 0, 1, 1, 2], [0], [0]>} : vector<8x4x24xbf16>, vector<8x24x128xbf16>, vector<8x4x128xf32> -> vector<8x4x128xf32>
    "tpu.trace_stop"() : () -> ()
    %c0_37 = arith.constant 0 : index
    %c0_38 = arith.constant 0 : index
    %78 = vector.load %arg9[%c0_37, %c0_38] : memref<8x4xf32, #tpu.memory_space<vmem>>, vector<8x4xf32>
    %79 = vector.shape_cast %78 : vector<8x4xf32> to vector<8x4x1xf32>
    %80 = vector.broadcast %79 : vector<8x4x1xf32> to vector<8x4x128xf32>
    %81 = arith.addf %77, %80 : vector<8x4x128xf32>
    %c0_39 = arith.constant 0 : index
    %c0_40 = arith.constant 0 : index
    %82 = vector.load %arg11[%c0_39, %c0_40] : memref<4x128xf32, #tpu.memory_space<vmem>>, vector<4x128xf32>
    %cst_41 = arith.constant dense<0.000000e+00> : vector<4x128xf32>
    %83 = vector.multi_reduction <add>, %81, %cst_41 [0] : vector<8x4x128xf32> to vector<4x128xf32>
    %84 = arith.addf %82, %83 : vector<4x128xf32>
    %c0_42 = arith.constant 0 : index
    %c0_43 = arith.constant 0 : index
    %85 = vector.load %arg11[%c0_42, %c0_43] : memref<4x128xf32, #tpu.memory_space<vmem>>, vector<4x128xf32>
    tpu.vector_store %arg11[%c0_42, %c0_43], %84 {strides = array<i32>} : memref<4x128xf32, #tpu.memory_space<vmem>>, vector<4x128xf32>,
    %c1_i32_44 = arith.constant 1 : i32
    %86 = arith.cmpi eq, %arg1, %c1_i32_44 : i32
    %87 = arith.extui %86 : i1 to i32
    %c0_i32_45 = arith.constant 0 : i32
    %88 = arith.cmpi ne, %87, %c0_i32_45 : i32
    scf.if %88 {
      %c0_46 = arith.constant 0 : index
      %c0_47 = arith.constant 0 : index
      %c0_48 = arith.constant 0 : index
      %89 = vector.load %arg3[%c0_46, %c0_47, %c0_48] : memref<1x4x128xf32, #tpu.memory_space<vmem>>, vector<1x4x128xf32>
      %90 = vector.shape_cast %89 : vector<1x4x128xf32> to vector<4x128xf32>
      %c0_49 = arith.constant 0 : index
      %c0_50 = arith.constant 0 : index
      %91 = vector.load %arg11[%c0_49, %c0_50] : memref<4x128xf32, #tpu.memory_space<vmem>>, vector<4x128xf32>
      %92 = arith.mulf %90, %91 : vector<4x128xf32>
      %cst_51 = arith.constant 1.000000e+00 : f32
      %93 = vector.broadcast %cst_51 : f32 to vector<4x128xf32>
      %94 = arith.addf %93, %92 : vector<4x128xf32>
      %95 = math.log %94 : vector<4x128xf32>
      %cst_52 = arith.constant dense<0.000000e+00> : vector<128xf32>
      %96 = vector.multi_reduction <add>, %95, %cst_52 [0] : vector<4x128xf32> to vector<128xf32>
      %97 = vector.shape_cast %96 : vector<128xf32> to vector<1x128xf32>
      %c0_53 = arith.constant 0 : index
      %c0_54 = arith.constant 0 : index
      %c0_55 = arith.constant 0 : index
      %98 = vector.load %arg10[%c0_53, %c0_54, %c0_55] : memref<1x1x128xf32, #tpu.memory_space<vmem>>, vector<1x1x128xf32>
      %99 = vector.shape_cast %98 : vector<1x1x128xf32> to vector<1x128xf32>
      %100 = vector.shape_cast %97 : vector<1x128xf32> to vector<1x1x128xf32>
      tpu.vector_store %arg10[%c0_53, %c0_54, %c0_55], %100 {strides = array<i32>} : memref<1x1x128xf32, #tpu.memory_space<vmem>>, vector<1x1x128xf32>,
    } else {
    }
    return
  }
  func.func @transform_0(%arg0: i32, %arg1: i32) -> (i32, i32, i32, i32) {
    %c0_i32 = arith.constant 0 : i32
    %c0_i32_0 = arith.constant 0 : i32
    %c0_i32_1 = arith.constant 0 : i32
    return %arg0, %arg1, %c0_i32, %c0_i32_0 : i32, i32, i32, i32
  }
  func.func @transform_1(%arg0: i32, %arg1: i32) -> (i32, i32, i32) {
    %c0_i32 = arith.constant 0 : i32
    %c0_i32_0 = arith.constant 0 : i32
    %c0_i32_1 = arith.constant 0 : i32
    return %arg0, %c0_i32, %c0_i32_0 : i32, i32, i32
  }
  func.func @transform_2(%arg0: i32, %arg1: i32) -> (i32, i32, i32) {
    %c0_i32 = arith.constant 0 : i32
    %c0_i32_0 = arith.constant 0 : i32
    %c0_i32_1 = arith.constant 0 : i32
    return %arg1, %c0_i32, %c0_i32_0 : i32, i32, i32
  }
  func.func @transform_3(%arg0: i32, %arg1: i32) -> (i32, i32) {
    %c0_i32 = arith.constant 0 : i32
    %c0_i32_0 = arith.constant 0 : i32
    return %arg1, %c0_i32 : i32, i32
  }
  func.func @transform_4(%arg0: i32, %arg1: i32) -> (i32, i32, i32) {
    %c0_i32 = arith.constant 0 : i32
    %c0_i32_0 = arith.constant 0 : i32
    %c0_i32_1 = arith.constant 0 : i32
    return %arg1, %c0_i32, %c0_i32_0 : i32, i32, i32
  }
  func.func @transform_5(%arg0: i32, %arg1: i32) -> (i32, i32) {
    %c0_i32 = arith.constant 0 : i32
    %c0_i32_0 = arith.constant 0 : i32
    return %arg1, %c0_i32 : i32, i32
  }
  func.func @transform_6(%arg0: i32, %arg1: i32) -> (i32, i32, i32) {
    %c0_i32 = arith.constant 0 : i32
    %c0_i32_0 = arith.constant 0 : i32
    %c0_i32_1 = arith.constant 0 : i32
    return %arg1, %c0_i32, %c0_i32_0 : i32, i32, i32
  }
  func.func @transform_7(%arg0: i32, %arg1: i32) -> (i32, i32) {
    %c0_i32 = arith.constant 0 : i32
    %c0_i32_0 = arith.constant 0 : i32
    return %arg1, %c0_i32 : i32, i32
  }
  func.func @transform_8(%arg0: i32, %arg1: i32) -> (i32, i32, i32) {
    %c0_i32 = arith.constant 0 : i32
    %c0_i32_0 = arith.constant 0 : i32
    %c0_i32_1 = arith.constant 0 : i32
    return %arg0, %c0_i32, %c0_i32_0 : i32, i32, i32
  }
}

</mosaic_0001>

<llo_original>
// kernel: tpu_custom_call.1
$region0: #{tpu_custom_call.1}
  #allocation0 [shape = 'u32[]', space=smem, size = 0x4, offset = 0x4, fixed_abs, tag = 'smem constant byte address 0x4 - core index']
  #allocation1 [shape = 'u32[144,128]{1,0:T(1,128)}', space=vmem, size = 0x12000, scoped, tag = 'internal scratch']
  #allocation2 [shape = 'f32[4,128]{1,0:T(4,128)}', space=vmem, size = 0x800, scoped, tag = 'scratch operand']
  %s0 = inlined_call_operand.vmem [shape: f32[2,16,10,128], index: 0, kind: input, shape index: {}]
  %s1 = inlined_call_operand.vmem [shape: f32[2,4,128], index: 1, kind: input, shape index: {}]
  %s2 = inlined_call_operand.vmem [shape: bf16[16,8,30], index: 2, kind: input, shape index: {}]
  %s3 = inlined_call_operand.vmem [shape: f32[16,8], index: 3, kind: input, shape index: {}]
  %s4 = inlined_call_operand.vmem [shape: bf16[16,8,24], index: 4, kind: input, shape index: {}]
  %s5 = inlined_call_operand.vmem [shape: f32[16,8], index: 5, kind: input, shape index: {}]
  %s6 = inlined_call_operand.vmem [shape: bf16[16,4,24], index: 6, kind: input, shape index: {}]
  %s7 = inlined_call_operand.vmem [shape: f32[16,4], index: 7, kind: input, shape index: {}]
  %s8 = inlined_call_operand.hbm [shape: f32[2,1,128], index: 8, kind: output, shape index: {}]
  %s9 = sld [smem:[#allocation0]]
  $region73: #{tpu_custom_call.1} parent=0
    _
  %s11 = ssub.s32 1, %s9
  %s12 = scalar_select 0, %s11, %s9
  $region1: #{tpu_custom_call.1} parent=0
    #allocation3 [shape = 'u8[1024]{0}', space=vmem, size = 0x400, scoped, tag = 'output window, operand 0']
    #allocation4 [shape = 's32[2]{0}', space=sflag, size = 0x8, scoped, tag = 'scoped memory for tpu_custom_call.1']
    %13 = vsyncpa [#allocation4], 0
    %s14 = scalar_lea.sflag [#allocation4], 1
    %15 = vsyncpa %s14, 0
    loop: start=0, step=1, limit=6
    $region2: #{tpu_custom_call.1} parent=1 // loop_pre_header
      _
    $region3: #{tpu_custom_call.1} parent=1 // loop_header
      %s17 = sphi 0, %s21
      %p18 = scmp.ge.s32.totalorder %s17, 6
      %s24 = sphi 0, %s36
      %s25 = sphi 0, %s32
      %s26 = sphi 0, %s24
      %s27 = sphi 0, %s25
      %s28 = sphi 0, %s26
      %s29 = sphi 0, %s27
      %s41 = sphi 0, %s43
      %s44 = sphi 0, %s41
      %s45 = sphi 0, %s44
      %s61 = sphi 0, %s45
      %s67 = sphi 0, %s69
      %s70 = sphi 0, %s67
      %s71 = sphi 0, %s70
      %s87 = sphi 0, %s71
      %s93 = sphi 0, %s95
      %s96 = sphi 0, %s93
      %s97 = sphi 0, %s96
      %s113 = sphi 0, %s97
      %s119 = sphi 0, %s121
      %s122 = sphi 0, %s119
      %s123 = sphi 0, %s122
      %s139 = sphi 0, %s123
      %s145 = sphi 0, %s147
      %s148 = sphi 0, %s145
      %s149 = sphi 0, %s148
      %s165 = sphi 0, %s149
      %s171 = sphi 0, %s173
      %s174 = sphi 0, %s171
      %s175 = sphi 0, %s174
      %s191 = sphi 0, %s175
      %s197 = sphi 0, %s199
      %s200 = sphi 0, %s197
      %s201 = sphi 0, %s200
      %s217 = sphi 0, %s201
      %s223 = sphi 0, %s225
      %s226 = sphi 0, %s223
      %s227 = sphi 0, %s226
      %s243 = sphi 0, %s227
      %s249 = sphi 0, %s251
      %s252 = sphi 0, %s249
      %s253 = sphi 0, %s252
      %s269 = sphi 0, %s253
    $region4: #{tpu_custom_call.1} parent=1 // loop_header_branch
      %20 = sbr.rel (%p18) target = $region8
    $region5: #{tpu_custom_call.1} parent=1 // loop_body
      %s22 = ssub.s32 %s17, 1
      %s23 = ssub.s32 %s17, 2
      %s30 = sadd.s32 1, %s25
      %p31 = scmp.ge.s32.totalorder %s30, 2
      %s32 = scalar_select %p31, 0, %s30
      %s33 = sadd.s32 1, %s24
      %s34 = scalar_select %p31, %s33, %s24
      %p35 = scmp.ge.s32.totalorder %s34, 2
      %s36 = scalar_select %p35, 0, %s34
      %s37 = ssub.s32 %s24, %s36
      %s38 = ssub.s32 %s25, %s32
      %s39 = sor.u32 %s37, %s38
      %p40 = scmp.eq.s32.totalorder %s39, 0
      %s42 = sadd.s32 %s41, 1
      %s43 = scalar_select %p40, %s41, %s42
      %p46 = pneg %p40
      %p47 = scmp.eq.s32.totalorder %s17, 3
      %p48 = por %p46, %p47
      %p49 = scmp.ne.s32.totalorder %s41, %s44
      %p50 = scmp.eq.s32.totalorder %s17, 0
      %p51 = por %p49, %p50
      %p52 = scmp.ne.s32.totalorder %s41, %s44
      %p53 = scmp.eq.s32.totalorder %s22, 3
      %p54 = por %p52, %p53
      %p55 = scmp.ne.s32.totalorder %s44, %s45
      %p56 = scmp.eq.s32.totalorder %s22, 0
      %p57 = por %p55, %p56
      %p58 = scmp.ne.s32.totalorder %s44, %s45
      %p59 = scmp.eq.s32.totalorder %s23, 3
      %p60 = por %p58, %p59
      %p62 = scmp.ne.s32.totalorder %s45, %s61
      %p63 = scmp.eq.s32.totalorder %s23, 0
      %p64 = por %p62, %p63
      %s65 = ssub.s32 %s24, %s36
      %p66 = scmp.eq.s32.totalorder %s65, 0
      %s68 = sadd.s32 %s67, 1
      %s69 = scalar_select %p66, %s67, %s68
      %p72 = pneg %p66
      %p73 = scmp.eq.s32.totalorder %s17, 3
      %p74 = por %p72, %p73
      %p75 = scmp.ne.s32.totalorder %s67, %s70
      %p76 = scmp.eq.s32.totalorder %s17, 0
      %p77 = por %p75, %p76
      %p78 = scmp.ne.s32.totalorder %s67, %s70
      %p79 = scmp.eq.s32.totalorder %s22, 3
      %p80 = por %p78, %p79
      %p81 = scmp.ne.s32.totalorder %s70, %s71
      %p82 = scmp.eq.s32.totalorder %s22, 0
      %p83 = por %p81, %p82
      %p84 = scmp.ne.s32.totalorder %s70, %s71
      %p85 = scmp.eq.s32.totalorder %s23, 3
      %p86 = por %p84, %p85
      %p88 = scmp.ne.s32.totalorder %s71, %s87
      %p89 = scmp.eq.s32.totalorder %s23, 0
      %p90 = por %p88, %p89
      %s91 = ssub.s32 %s25, %s32
      %p92 = scmp.eq.s32.totalorder %s91, 0
      %s94 = sadd.s32 %s93, 1
      %s95 = scalar_select %p92, %s93, %s94
      %p98 = pneg %p92
      %p99 = scmp.eq.s32.totalorder %s17, 3
      %p100 = por %p98, %p99
      %p101 = scmp.ne.s32.totalorder %s93, %s96
      %p102 = scmp.eq.s32.totalorder %s17, 0
      %p103 = por %p101, %p102
      %p104 = scmp.ne.s32.totalorder %s93, %s96
      %p105 = scmp.eq.s32.totalorder %s22, 3
      %p106 = por %p104, %p105
      %p107 = scmp.ne.s32.totalorder %s96, %s97
      %p108 = scmp.eq.s32.totalorder %s22, 0
      %p109 = por %p107, %p108
      %p110 = scmp.ne.s32.totalorder %s96, %s97
      %p111 = scmp.eq.s32.totalorder %s23, 3
      %p112 = por %p110, %p111
      %p114 = scmp.ne.s32.totalorder %s97, %s113
      %p115 = scmp.eq.s32.totalorder %s23, 0
      %p116 = por %p114, %p115
      %s117 = ssub.s32 %s25, %s32
      %p118 = scmp.eq.s32.totalorder %s117, 0
      %s120 = sadd.s32 %s119, 1
      %s121 = scalar_select %p118, %s119, %s120
      %p124 = pneg %p118
      %p125 = scmp.eq.s32.totalorder %s17, 3
      %p126 = por %p124, %p125
      %p127 = scmp.ne.s32.totalorder %s119, %s122
      %p128 = scmp.eq.s32.totalorder %s17, 0
      %p129 = por %p127, %p128
      %p130 = scmp.ne.s32.totalorder %s119, %s122
      %p131 = scmp.eq.s32.totalorder %s22, 3
      %p132 = por %p130, %p131
      %p133 = scmp.ne.s32.totalorder %s122, %s123
      %p134 = scmp.eq.s32.totalorder %s22, 0
      %p135 = por %p133, %p134
      %p136 = scmp.ne.s32.totalorder %s122, %s123
      %p137 = scmp.eq.s32.totalorder %s23, 3
      %p138 = por %p136, %p137
      %p140 = scmp.ne.s32.totalorder %s123, %s139
      %p141 = scmp.eq.s32.totalorder %s23, 0
      %p142 = por %p140, %p141
      %s143 = ssub.s32 %s25, %s32
      %p144 = scmp.eq.s32.totalorder %s143, 0
      %s146 = sadd.s32 %s145, 1
      %s147 = scalar_select %p144, %s145, %s146
      %p150 = pneg %p144
      %p151 = scmp.eq.s32.totalorder %s17, 3
      %p152 = por %p150, %p151
      %p153 = scmp.ne.s32.totalorder %s145, %s148
      %p154 = scmp.eq.s32.totalorder %s17, 0
      %p155 = por %p153, %p154
      %p156 = scmp.ne.s32.totalorder %s145, %s148
      %p157 = scmp.eq.s32.totalorder %s22, 3
      %p158 = por %p156, %p157
      %p159 = scmp.ne.s32.totalorder %s148, %s149
      %p160 = scmp.eq.s32.totalorder %s22, 0
      %p161 = por %p159, %p160
      %p162 = scmp.ne.s32.totalorder %s148, %s149
      %p163 = scmp.eq.s32.totalorder %s23, 3
      %p164 = por %p162, %p163
      %p166 = scmp.ne.s32.totalorder %s149, %s165
      %p167 = scmp.eq.s32.totalorder %s23, 0
      %p168 = por %p166, %p167
      %s169 = ssub.s32 %s25, %s32
      %p170 = scmp.eq.s32.totalorder %s169, 0
      %s172 = sadd.s32 %s171, 1
      %s173 = scalar_select %p170, %s171, %s172
      %p176 = pneg %p170
      %p177 = scmp.eq.s32.totalorder %s17, 3
      %p178 = por %p176, %p177
      %p179 = scmp.ne.s32.totalorder %s171, %s174
      %p180 = scmp.eq.s32.totalorder %s17, 0
      %p181 = por %p179, %p180
      %p182 = scmp.ne.s32.totalorder %s171, %s174
      %p183 = scmp.eq.s32.totalorder %s22, 3
      %p184 = por %p182, %p183
      %p185 = scmp.ne.s32.totalorder %s174, %s175
      %p186 = scmp.eq.s32.totalorder %s22, 0
      %p187 = por %p185, %p186
      %p188 = scmp.ne.s32.totalorder %s174, %s175
      %p189 = scmp.eq.s32.totalorder %s23, 3
      %p190 = por %p188, %p189
      %p192 = scmp.ne.s32.totalorder %s175, %s191
      %p193 = scmp.eq.s32.totalorder %s23, 0
      %p194 = por %p192, %p193
      %s195 = ssub.s32 %s25, %s32
      %p196 = scmp.eq.s32.totalorder %s195, 0
      %s198 = sadd.s32 %s197, 1
      %s199 = scalar_select %p196, %s197, %s198
      %p202 = pneg %p196
      %p203 = scmp.eq.s32.totalorder %s17, 3
      %p204 = por %p202, %p203
      %p205 = scmp.ne.s32.totalorder %s197, %s200
      %p206 = scmp.eq.s32.totalorder %s17, 0
      %p207 = por %p205, %p206
      %p208 = scmp.ne.s32.totalorder %s197, %s200
      %p209 = scmp.eq.s32.totalorder %s22, 3
      %p210 = por %p208, %p209
      %p211 = scmp.ne.s32.totalorder %s200, %s201
      %p212 = scmp.eq.s32.totalorder %s22, 0
      %p213 = por %p211, %p212
      %p214 = scmp.ne.s32.totalorder %s200, %s201
      %p215 = scmp.eq.s32.totalorder %s23, 3
      %p216 = por %p214, %p215
      %p218 = scmp.ne.s32.totalorder %s201, %s217
      %p219 = scmp.eq.s32.totalorder %s23, 0
      %p220 = por %p218, %p219
      %s221 = ssub.s32 %s25, %s32
      %p222 = scmp.eq.s32.totalorder %s221, 0
      %s224 = sadd.s32 %s223, 1
      %s225 = scalar_select %p222, %s223, %s224
      %p228 = pneg %p222
      %p229 = scmp.eq.s32.totalorder %s17, 3
      %p230 = por %p228, %p229
      %p231 = scmp.ne.s32.totalorder %s223, %s226
      %p232 = scmp.eq.s32.totalorder %s17, 0
      %p233 = por %p231, %p232
      %p234 = scmp.ne.s32.totalorder %s223, %s226
      %p235 = scmp.eq.s32.totalorder %s22, 3
      %p236 = por %p234, %p235
      %p237 = scmp.ne.s32.totalorder %s226, %s227
      %p238 = scmp.eq.s32.totalorder %s22, 0
      %p239 = por %p237, %p238
      %p240 = scmp.ne.s32.totalorder %s226, %s227
      %p241 = scmp.eq.s32.totalorder %s23, 3
      %p242 = por %p240, %p241
      %p244 = scmp.ne.s32.totalorder %s227, %s243
      %p245 = scmp.eq.s32.totalorder %s23, 0
      %p246 = por %p244, %p245
      %s247 = ssub.s32 %s24, %s36
      %p248 = scmp.eq.s32.totalorder %s247, 0
      %s250 = sadd.s32 %s249, 1
      %s251 = scalar_select %p248, %s249, %s250
      %p254 = pneg %p248
      %p255 = scmp.eq.s32.totalorder %s17, 3
      %p256 = por %p254, %p255
      %p257 = scmp.ne.s32.totalorder %s249, %s252
      %p258 = scmp.eq.s32.totalorder %s17, 0
      %p259 = por %p257, %p258
      %p260 = scmp.ne.s32.totalorder %s249, %s252
      %p261 = scmp.eq.s32.totalorder %s22, 3
      %p262 = por %p260, %p261
      %p263 = scmp.ne.s32.totalorder %s252, %s253
      %p264 = scmp.eq.s32.totalorder %s22, 0
      %p265 = por %p263, %p264
      %p266 = scmp.ne.s32.totalorder %s252, %s253
      %p267 = scmp.eq.s32.totalorder %s23, 3
      %p268 = por %p266, %p267
      %p270 = scmp.ne.s32.totalorder %s253, %s269
      %p271 = scmp.eq.s32.totalorder %s23, 0
      %p272 = por %p270, %p271
      %p273 = scmp.le.s32.totalorder 1, %s17
      %p274 = scmp.lt.s32.totalorder %s17, 5
      %p275 = pnand %p273, %p274
      %p276 = pneg %p275
      // Predicated region
      $region9: #{tpu_custom_call.1} parent=5 // pred_check
        _
      $region10: #{tpu_custom_call.1} parent=5 // pred_check_branch
        %278 = sbr.rel (%p275) target = $region12
      $region11: #{tpu_custom_call.1} parent=5 // pred_region
        %s279 = ssub.s32 %s17, 1
      $region12: #{tpu_custom_call.1} parent=5 // pred_fallthru
        _
      %p280 = scmp.lt.s32.totalorder %s17, 4
      // Predicated region
      $region13: #{tpu_custom_call.1} parent=5 // pred_check
        %p281 = pneg %p280
      $region14: #{tpu_custom_call.1} parent=5 // pred_check_branch
        %283 = sbr.rel (%p281) target = $region16
      $region15: #{tpu_custom_call.1} parent=5 // pred_region
        // Predicated region
        $region17: #{tpu_custom_call.1} parent=15 // pred_check
          %p284 = pneg %p51
        $region18: #{tpu_custom_call.1} parent=15 // pred_check_branch
          %286 = sbr.rel (%p284) target = $region20
        $region19: #{tpu_custom_call.1} parent=15 // pred_region
          %s287 = smul.u32 8, %s25
          %p288 = scmp.lt.s32.totalorder %s24, 1
          %s289 = scalar_select %p288, %s24, 1
          %p290 = scmp.lt.s32.totalorder %s287, 15
          %s291 = scalar_select %p290, %s287, 15
          %s292 = smul.addr %s291, 2
          %s293 = smul.addr %s289, 32
          %s294 = sadd.s32 %s292, %s293
          %s295 = smul.addr %s294, 8
          %s296 = scalar_lea.vmem %s0, %s295
          %s297 = smul.u32 8, %s25
        $region20: #{tpu_custom_call.1} parent=15 // pred_fallthru
          _
        // Predicated region
        $region21: #{tpu_custom_call.1} parent=15 // pred_check
          %p298 = pneg %p77
        $region22: #{tpu_custom_call.1} parent=15 // pred_check_branch
          %300 = sbr.rel (%p298) target = $region24
        $region23: #{tpu_custom_call.1} parent=15 // pred_region
          %p301 = scmp.lt.s32.totalorder %s24, 1
          %s302 = scalar_select %p301, %s24, 1
          %s303 = smul.addr %s302, 4
          %s304 = scalar_lea.vmem %s1, %s303
        $region24: #{tpu_custom_call.1} parent=15 // pred_fallthru
          _
        // Predicated region
        $region25: #{tpu_custom_call.1} parent=15 // pred_check
          %p305 = pneg %p103
        $region26: #{tpu_custom_call.1} parent=15 // pred_check_branch
          %307 = sbr.rel (%p305) target = $region28
        $region27: #{tpu_custom_call.1} parent=15 // pred_region
          %s308 = smul.u32 8, %s25
          %p309 = scmp.lt.s32.totalorder %s308, 15
          %s310 = scalar_select %p309, %s308, 15
          %s311 = smul.addr %s310, 4
          %s312 = scalar_lea.vmem %s2, %s311
          %s313 = smul.u32 8, %s25
        $region28: #{tpu_custom_call.1} parent=15 // pred_fallthru
          _
        // Predicated region
        $region29: #{tpu_custom_call.1} parent=15 // pred_check
          %p314 = pneg %p129
        $region30: #{tpu_custom_call.1} parent=15 // pred_check_branch
          %316 = sbr.rel (%p314) target = $region32
        $region31: #{tpu_custom_call.1} parent=15 // pred_region
          %p317 = scmp.lt.s32.totalorder %s25, 1
          %s318 = scalar_select %p317, %s25, 1
          %s319 = smul.addr %s318, 8
          %s320 = scalar_lea.vmem %s3, %s319
        $region32: #{tpu_custom_call.1} parent=15 // pred_fallthru
          _
        // Predicated region
        $region33: #{tpu_custom_call.1} parent=15 // pred_check
          %p321 = pneg %p155
        $region34: #{tpu_custom_call.1} parent=15 // pred_check_branch
          %323 = sbr.rel (%p321) target = $region36
        $region35: #{tpu_custom_call.1} parent=15 // pred_region
          %s324 = smul.u32 8, %s25
          %p325 = scmp.lt.s32.totalorder %s324, 15
          %s326 = scalar_select %p325, %s324, 15
          %s327 = smul.addr %s326, 4
          %s328 = scalar_lea.vmem %s4, %s327
          %s329 = smul.u32 8, %s25
        $region36: #{tpu_custom_call.1} parent=15 // pred_fallthru
          _
        // Predicated region
        $region37: #{tpu_custom_call.1} parent=15 // pred_check
          %p330 = pneg %p181
        $region38: #{tpu_custom_call.1} parent=15 // pred_check_branch
          %332 = sbr.rel (%p330) target = $region40
        $region39: #{tpu_custom_call.1} parent=15 // pred_region
          %p333 = scmp.lt.s32.totalorder %s25, 1
          %s334 = scalar_select %p333, %s25, 1
          %s335 = smul.addr %s334, 8
          %s336 = scalar_lea.vmem %s5, %s335
        $region40: #{tpu_custom_call.1} parent=15 // pred_fallthru
          _
        // Predicated region
        $region41: #{tpu_custom_call.1} parent=15 // pred_check
          %p337 = pneg %p207
        $region42: #{tpu_custom_call.1} parent=15 // pred_check_branch
          %339 = sbr.rel (%p337) target = $region44
        $region43: #{tpu_custom_call.1} parent=15 // pred_region
          %s340 = smul.u32 8, %s25
          %p341 = scmp.lt.s32.totalorder %s340, 15
          %s342 = scalar_select %p341, %s340, 15
          %s343 = smul.addr %s342, 2
          %s344 = scalar_lea.vmem %s6, %s343
          %s345 = smul.u32 8, %s25
        $region44: #{tpu_custom_call.1} parent=15 // pred_fallthru
          _
        // Predicated region
        $region45: #{tpu_custom_call.1} parent=15 // pred_check
          %p346 = pneg %p233
        $region46: #{tpu_custom_call.1} parent=15 // pred_check_branch
          %348 = sbr.rel (%p346) target = $region48
        $region47: #{tpu_custom_call.1} parent=15 // pred_region
          %p349 = scmp.lt.s32.totalorder %s25, 1
          %s350 = scalar_select %p349, %s25, 1
          %s351 = smul.addr %s350, 8
          %s352 = scalar_lea.vmem %s7, %s351
        $region48: #{tpu_custom_call.1} parent=15 // pred_fallthru
          _
      $region16: #{tpu_custom_call.1} parent=5 // pred_fallthru
        _
      %p353 = scmp.le.s32.totalorder 1, %s17
      %p354 = scmp.lt.s32.totalorder %s17, 5
      %p355 = pnand %p353, %p354
      %p356 = pneg %p355
      // Predicated region
      $region49: #{tpu_custom_call.1} parent=5 // pred_check
        _
      $region50: #{tpu_custom_call.1} parent=5 // pred_check_branch
        %358 = sbr.rel (%p355) target = $region52
      $region51: #{tpu_custom_call.1} parent=5 // pred_region
        %s359 = ssub.s32 %s17, 1
        %s360 = smul.u32 8, %s27
        %p361 = scmp.lt.s32.totalorder %s26, 1
        %s362 = scalar_select %p361, %s26, 1
        %p363 = scmp.lt.s32.totalorder %s360, 15
        %s364 = scalar_select %p363, %s360, 15
        %s365 = smul.addr %s364, 2
        %s366 = smul.addr %s362, 32
        %s367 = sadd.s32 %s365, %s366
        %s368 = smul.addr %s367, 8
        %s369 = scalar_lea.vmem %s0, %s368
        %p370 = pneg %p57
        %p371 = pneg %p54
        %p372 = scmp.lt.s32.totalorder %s26, 1
        %s373 = scalar_select %p372, %s26, 1
        %s374 = smul.addr %s373, 4
        %s375 = scalar_lea.vmem %s1, %s374
        %p376 = pneg %p83
        %p377 = pneg %p80
        %s378 = smul.u32 8, %s27
        %p379 = scmp.lt.s32.totalorder %s378, 15
        %s380 = scalar_select %p379, %s378, 15
        %s381 = smul.addr %s380, 4
        %s382 = scalar_lea.vmem %s2, %s381
        %p383 = pneg %p109
        %p384 = pneg %p106
        %p385 = scmp.lt.s32.totalorder %s27, 1
        %s386 = scalar_select %p385, %s27, 1
        %s387 = smul.addr %s386, 8
        %s388 = scalar_lea.vmem %s3, %s387
        %p389 = pneg %p135
        %p390 = pneg %p132
        %s391 = smul.u32 8, %s27
        %p392 = scmp.lt.s32.totalorder %s391, 15
        %s393 = scalar_select %p392, %s391, 15
        %s394 = smul.addr %s393, 4
        %s395 = scalar_lea.vmem %s4, %s394
        %p396 = pneg %p161
        %p397 = pneg %p158
        %p398 = scmp.lt.s32.totalorder %s27, 1
        %s399 = scalar_select %p398, %s27, 1
        %s400 = smul.addr %s399, 8
        %s401 = scalar_lea.vmem %s5, %s400
        %p402 = pneg %p187
        %p403 = pneg %p184
        %s404 = smul.u32 8, %s27
        %p405 = scmp.lt.s32.totalorder %s404, 15
        %s406 = scalar_select %p405, %s404, 15
        %s407 = smul.addr %s406, 2
        %s408 = scalar_lea.vmem %s6, %s407
        %p409 = pneg %p213
        %p410 = pneg %p210
        %p411 = scmp.lt.s32.totalorder %s27, 1
        %s412 = scalar_select %p411, %s27, 1
        %s413 = smul.addr %s412, 8
        %s414 = scalar_lea.vmem %s7, %s413
        %p415 = pneg %p239
        %p416 = pneg %p236
        %p417 = pneg %p265
        %p418 = pneg %p262
        %s419 = sand.u32 %s252, 1
        %s420 = scalar_lea.sflag [#allocation4], %s419
        %s421 = sand.u32 %s252, 1
        %s422 = scalar_lea.vmem [#allocation3], %s421
        %s423 = smul.u32 8, %s27
        %p424 = scmp.lt.s32.totalorder %s26, 1
        %s425 = scalar_select %p424, %s26, 1
        %p426 = scmp.lt.s32.totalorder %s423, 15
        %s427 = scalar_select %p426, %s423, 15
        %s428 = smul.addr %s427, 2
        %s429 = smul.addr %s425, 32
        %s430 = sadd.s32 %s428, %s429
        %s431 = smul.addr %s430, 8
        %s432 = scalar_lea.vmem %s0, %s431
        %s433 = smul.u32 8, %s27
        %p434 = scmp.lt.s32.totalorder %s26, 1
        %s435 = scalar_select %p434, %s26, 1
        %s436 = smul.addr %s435, 4
        %s437 = scalar_lea.vmem %s1, %s436
        %s438 = smul.u32 8, %s27
        %p439 = scmp.lt.s32.totalorder %s438, 15
        %s440 = scalar_select %p439, %s438, 15
        %s441 = smul.addr %s440, 4
        %s442 = scalar_lea.vmem %s2, %s441
        %s443 = smul.u32 8, %s27
        %p444 = scmp.lt.s32.totalorder %s27, 1
        %s445 = scalar_select %p444, %s27, 1
        %s446 = smul.addr %s445, 8
        %s447 = scalar_lea.vmem %s3, %s446
        %s448 = smul.u32 8, %s27
        %p449 = scmp.lt.s32.totalorder %s448, 15
        %s450 = scalar_select %p449, %s448, 15
        %s451 = smul.addr %s450, 4
        %s452 = scalar_lea.vmem %s4, %s451
        %s453 = smul.u32 8, %s27
        %p454 = scmp.lt.s32.totalorder %s27, 1
        %s455 = scalar_select %p454, %s27, 1
        %s456 = smul.addr %s455, 8
        %s457 = scalar_lea.vmem %s5, %s456
        %s458 = smul.u32 8, %s27
        %p459 = scmp.lt.s32.totalorder %s458, 15
        %s460 = scalar_select %p459, %s458, 15
        %s461 = smul.addr %s460, 2
        %s462 = scalar_lea.vmem %s6, %s461
        %s463 = smul.u32 8, %s27
        %p464 = scmp.lt.s32.totalorder %s27, 1
        %s465 = scalar_select %p464, %s27, 1
        %s466 = smul.addr %s465, 8
        %s467 = scalar_lea.vmem %s7, %s466
        %p469 = scmp.eq.s32.totalorder %s27, 0
        // Predicated region
        $region53: #{tpu_custom_call.1} parent=51 // pred_check
          %p470 = pneg %p469
        $region54: #{tpu_custom_call.1} parent=51 // pred_check_branch
          %472 = sbr.rel (%p470) target = $region56
        $region55: #{tpu_custom_call.1} parent=51 // pred_region
          %473 = vst [vmem:[#allocation2] sm:$0xf] 0.0
        $region56: #{tpu_custom_call.1} parent=51 // pred_fallthru
          _
        %v474 = vlaneseq
        %v475 = vand.u32 %v474, 127
        %v476 = vadd.s32 %v475, 4294967295
        %vm477 = vcmp.ge.s32.totalorder %v476, 0
        %vm478 = vcmp.lt.s32.totalorder %v476, 128
        %vm479 = vmand %vm477, %vm478
        %v480 = vadd.s32 %v475, 1
        %vm481 = vcmp.ge.s32.totalorder %v480, 0
        %vm482 = vcmp.lt.s32.totalorder %v480, 128
        %vm483 = vmand %vm481, %vm482
        %v484 = vld [vmem:[%s432] sm:$0xff]
        %v485 = vld [vmem:[%s432 + $0x8] sm:$0x3]
        %v486 = vld [vmem:[%s432 + $0x10] sm:$0xff]
        %v487 = vld [vmem:[%s432 + $0x18] sm:$0x3]
        %v488 = vld [vmem:[%s432 + $0x20] sm:$0xff]
        %v489 = vld [vmem:[%s432 + $0x28] sm:$0x3]
        %v490 = vld [vmem:[%s432 + $0x30] sm:$0xff]
        %v491 = vld [vmem:[%s432 + $0x38] sm:$0x3]
        %v492 = vld [vmem:[%s432 + $0x40] sm:$0xff]
        %v493 = vld [vmem:[%s432 + $0x48] sm:$0x3]
        %v494 = vld [vmem:[%s432 + $0x50] sm:$0xff]
        %v495 = vld [vmem:[%s432 + $0x58] sm:$0x3]
        %v496 = vld [vmem:[%s432 + $0x60] sm:$0xff]
        %v497 = vld [vmem:[%s432 + $0x68] sm:$0x3]
        %v498 = vld [vmem:[%s432 + $0x70] sm:$0xff]
        %v499 = vld [vmem:[%s432 + $0x78] sm:$0x3]
        %500 = vrot.lane.b32.xlu0 %v484, 1
        %v501 = vpop.permute.xlu0 %500
        %502 = vrot.lane.b32.xlu0 %v485, 1
        %v503 = vpop.permute.xlu0 %502
        %504 = vrot.lane.b32.xlu0 %v486, 1
        %v505 = vpop.permute.xlu0 %504
        %506 = vrot.lane.b32.xlu0 %v487, 1
        %v507 = vpop.permute.xlu0 %506
        %508 = vrot.lane.b32.xlu0 %v488, 1
        %v509 = vpop.permute.xlu0 %508
        %510 = vrot.lane.b32.xlu0 %v489, 1
        %v511 = vpop.permute.xlu0 %510
        %512 = vrot.lane.b32.xlu0 %v490, 1
        %v513 = vpop.permute.xlu0 %512
        %514 = vrot.lane.b32.xlu0 %v491, 1
        %v515 = vpop.permute.xlu0 %514
        %516 = vrot.lane.b32.xlu0 %v492, 1
        %v517 = vpop.permute.xlu0 %516
        %518 = vrot.lane.b32.xlu0 %v493, 1
        %v519 = vpop.permute.xlu0 %518
        %520 = vrot.lane.b32.xlu0 %v494, 1
        %v521 = vpop.permute.xlu0 %520
        %522 = vrot.lane.b32.xlu0 %v495, 1
        %v523 = vpop.permute.xlu0 %522
        %524 = vrot.lane.b32.xlu0 %v496, 1
        %v525 = vpop.permute.xlu0 %524
        %526 = vrot.lane.b32.xlu0 %v497, 1
        %v527 = vpop.permute.xlu0 %526
        %528 = vrot.lane.b32.xlu0 %v498, 1
        %v529 = vpop.permute.xlu0 %528
        %530 = vrot.lane.b32.xlu0 %v499, 1
        %v531 = vpop.permute.xlu0 %530
        %v532 = vsel %vm479, 1, 0
        %vm533 = vcmp.eq.s32.totalorder %v532, 1
        %v534 = vsel %vm533, %v501, 0.0
        %v535 = vsel %vm533, %v503, 0.0
        %v536 = vsel %vm533, %v505, 0.0
        %v537 = vsel %vm533, %v507, 0.0
        %v538 = vsel %vm533, %v509, 0.0
        %v539 = vsel %vm533, %v511, 0.0
        %v540 = vsel %vm533, %v513, 0.0
        %v541 = vsel %vm533, %v515, 0.0
        %v542 = vsel %vm533, %v517, 0.0
        %v543 = vsel %vm533, %v519, 0.0
        %v544 = vsel %vm533, %v521, 0.0
        %v545 = vsel %vm533, %v523, 0.0
        %v546 = vsel %vm533, %v525, 0.0
        %v547 = vsel %vm533, %v527, 0.0
        %v548 = vsel %vm533, %v529, 0.0
        %v549 = vsel %vm533, %v531, 0.0
        %550 = vrot.lane.b32.xlu0 %v484, 127
        %v551 = vpop.permute.xlu0 %550
        %552 = vrot.lane.b32.xlu0 %v485, 127
        %v553 = vpop.permute.xlu0 %552
        %554 = vrot.lane.b32.xlu0 %v486, 127
        %v555 = vpop.permute.xlu0 %554
        %556 = vrot.lane.b32.xlu0 %v487, 127
        %v557 = vpop.permute.xlu0 %556
        %558 = vrot.lane.b32.xlu0 %v488, 127
        %v559 = vpop.permute.xlu0 %558
        %560 = vrot.lane.b32.xlu0 %v489, 127
        %v561 = vpop.permute.xlu0 %560
        %562 = vrot.lane.b32.xlu0 %v490, 127
        %v563 = vpop.permute.xlu0 %562
        %564 = vrot.lane.b32.xlu0 %v491, 127
        %v565 = vpop.permute.xlu0 %564
        %566 = vrot.lane.b32.xlu0 %v492, 127
        %v567 = vpop.permute.xlu0 %566
        %568 = vrot.lane.b32.xlu0 %v493, 127
        %v569 = vpop.permute.xlu0 %568
        %570 = vrot.lane.b32.xlu0 %v494, 127
        %v571 = vpop.permute.xlu0 %570
        %572 = vrot.lane.b32.xlu0 %v495, 127
        %v573 = vpop.permute.xlu0 %572
        %574 = vrot.lane.b32.xlu0 %v496, 127
        %v575 = vpop.permute.xlu0 %574
        %576 = vrot.lane.b32.xlu0 %v497, 127
        %v577 = vpop.permute.xlu0 %576
        %578 = vrot.lane.b32.xlu0 %v498, 127
        %v579 = vpop.permute.xlu0 %578
        %580 = vrot.lane.b32.xlu0 %v499, 127
        %v581 = vpop.permute.xlu0 %580
        %v582 = vsel %vm483, 1, 0
        %vm583 = vcmp.eq.s32.totalorder %v582, 1
        %v584 = vsel %vm583, %v551, 0.0
        %v585 = vsel %vm583, %v553, 0.0
        %v586 = vsel %vm583, %v555, 0.0
        %v587 = vsel %vm583, %v557, 0.0
        %v588 = vsel %vm583, %v559, 0.0
        %v589 = vsel %vm583, %v561, 0.0
        %v590 = vsel %vm583, %v563, 0.0
        %v591 = vsel %vm583, %v565, 0.0
        %v592 = vsel %vm583, %v567, 0.0
        %v593 = vsel %vm583, %v569, 0.0
        %v594 = vsel %vm583, %v571, 0.0
        %v595 = vsel %vm583, %v573, 0.0
        %v596 = vsel %vm583, %v575, 0.0
        %v597 = vsel %vm583, %v577, 0.0
        %v598 = vsel %vm583, %v579, 0.0
        %v599 = vsel %vm583, %v581, 0.0
        %vm616 = vcmask 1041408
        %v617 = vrot.slane %v484, 6
        %v618 = vrot.slane %v485, 6
        %v619 = vsel %vm616, %v617, %v618
        %v620 = vrot.slane %v486, 6
        %v621 = vrot.slane %v487, 6
        %v622 = vsel %vm616, %v620, %v621
        %v623 = vrot.slane %v488, 6
        %v624 = vrot.slane %v489, 6
        %v625 = vsel %vm616, %v623, %v624
        %v626 = vrot.slane %v490, 6
        %v627 = vrot.slane %v491, 6
        %v628 = vsel %vm616, %v626, %v627
        %v629 = vrot.slane %v492, 6
        %v630 = vrot.slane %v493, 6
        %v631 = vsel %vm616, %v629, %v630
        %v632 = vrot.slane %v494, 6
        %v633 = vrot.slane %v495, 6
        %v634 = vsel %vm616, %v632, %v633
        %v635 = vrot.slane %v496, 6
        %v636 = vrot.slane %v497, 6
        %v637 = vsel %vm616, %v635, %v636
        %v638 = vrot.slane %v498, 6
        %v639 = vrot.slane %v499, 6
        %v640 = vsel %vm616, %v638, %v639
        %vm673 = vcmask 1043456
        %v674 = vrot.slane %v584, 4
        %v675 = vrot.slane %v585, 4
        %v676 = vsel %vm673, %v674, %v675
        %v677 = vrot.slane %v586, 4
        %v678 = vrot.slane %v587, 4
        %v679 = vsel %vm673, %v677, %v678
        %v680 = vrot.slane %v588, 4
        %v681 = vrot.slane %v589, 4
        %v682 = vsel %vm673, %v680, %v681
        %v683 = vrot.slane %v590, 4
        %v684 = vrot.slane %v591, 4
        %v685 = vsel %vm673, %v683, %v684
        %v686 = vrot.slane %v592, 4
        %v687 = vrot.slane %v593, 4
        %v688 = vsel %vm673, %v686, %v687
        %v689 = vrot.slane %v594, 4
        %v690 = vrot.slane %v595, 4
        %v691 = vsel %vm673, %v689, %v690
        %v692 = vrot.slane %v596, 4
        %v693 = vrot.slane %v597, 4
        %v694 = vsel %vm673, %v692, %v693
        %v695 = vrot.slane %v598, 4
        %v696 = vrot.slane %v599, 4
        %v697 = vsel %vm673, %v695, %v696
        %v714 = vsel %vm616, %v535, %v617
        %v715 = vsel %vm616, %v537, %v620
        %v716 = vsel %vm616, %v539, %v623
        %v717 = vsel %vm616, %v541, %v626
        %v718 = vsel %vm616, %v543, %v629
        %v719 = vsel %vm616, %v545, %v632
        %v720 = vsel %vm616, %v547, %v635
        %v721 = vsel %vm616, %v549, %v638
        %v722 = vsel %vm673, %v619, %v674
        %v723 = vsel %vm673, %v622, %v677
        %v724 = vsel %vm673, %v625, %v680
        %v725 = vsel %vm673, %v628, %v683
        %v726 = vsel %vm673, %v631, %v686
        %v727 = vsel %vm673, %v634, %v689
        %v728 = vsel %vm673, %v637, %v692
        %v729 = vsel %vm673, %v640, %v695
        %v730 = vpack.c.bf16 %v714, %v534
        %v731 = vpack.c.bf16 %v676, %v722
        %v732 = vpack.c.bf16 %v715, %v536
        %v733 = vpack.c.bf16 %v679, %v723
        %v734 = vpack.c.bf16 %v716, %v538
        %v735 = vpack.c.bf16 %v682, %v724
        %v736 = vpack.c.bf16 %v717, %v540
        %v737 = vpack.c.bf16 %v685, %v725
        %v738 = vpack.c.bf16 %v718, %v542
        %v739 = vpack.c.bf16 %v688, %v726
        %v740 = vpack.c.bf16 %v719, %v544
        %v741 = vpack.c.bf16 %v691, %v727
        %v742 = vpack.c.bf16 %v720, %v546
        %v743 = vpack.c.bf16 %v694, %v728
        %v744 = vpack.c.bf16 %v721, %v548
        %v745 = vpack.c.bf16 %v697, %v729
        %v746 = vld [vmem:[%s442] sm:$0xf]
        %v747 = vld [vmem:[%s442 + $0x4] sm:$0xf]
        %v748 = vld [vmem:[%s442 + $0x8] sm:$0xf]
        %v749 = vld [vmem:[%s442 + $0xc] sm:$0xf]
        %v750 = vld [vmem:[%s442 + $0x10] sm:$0xf]
        %v751 = vld [vmem:[%s442 + $0x14] sm:$0xf]
        %v752 = vld [vmem:[%s442 + $0x18] sm:$0xf]
        %v753 = vld [vmem:[%s442 + $0x1c] sm:$0xf]
        %v754 = vld [vmem:[%s447] sm:$0xff]
        %v755 = vlaneseq
        %v756 = vshrl.u32 %v755, 7
        %v757 = vsub.s32 0, %v756
        %v758 = vrot.slane %v754, %v757
        %760 = vbcast.lane.b32.xlu0 %v758, 256
        %v761 = vpop.permute.xlu0 %760
        %v762 = vlaneseq
        %v763 = vshrl.u32 %v762, 7
        %v764 = vsub.s32 1, %v763
        %v765 = vrot.slane %v754, %v764
        %767 = vbcast.lane.b32.xlu0 %v765, 256
        %v768 = vpop.permute.xlu0 %767
        %v769 = vlaneseq
        %v770 = vshrl.u32 %v769, 7
        %v771 = vsub.s32 2, %v770
        %v772 = vrot.slane %v754, %v771
        %774 = vbcast.lane.b32.xlu0 %v772, 256
        %v775 = vpop.permute.xlu0 %774
        %v776 = vlaneseq
        %v777 = vshrl.u32 %v776, 7
        %v778 = vsub.s32 3, %v777
        %v779 = vrot.slane %v754, %v778
        %781 = vbcast.lane.b32.xlu0 %v779, 256
        %v782 = vpop.permute.xlu0 %781
        %v783 = vlaneseq
        %v784 = vshrl.u32 %v783, 7
        %v785 = vsub.s32 4, %v784
        %v786 = vrot.slane %v754, %v785
        %788 = vbcast.lane.b32.xlu0 %v786, 256
        %v789 = vpop.permute.xlu0 %788
        %v790 = vlaneseq
        %v791 = vshrl.u32 %v790, 7
        %v792 = vsub.s32 5, %v791
        %v793 = vrot.slane %v754, %v792
        %795 = vbcast.lane.b32.xlu0 %v793, 256
        %v796 = vpop.permute.xlu0 %795
        %v797 = vlaneseq
        %v798 = vshrl.u32 %v797, 7
        %v799 = vsub.s32 6, %v798
        %v800 = vrot.slane %v754, %v799
        %802 = vbcast.lane.b32.xlu0 %v800, 256
        %v803 = vpop.permute.xlu0 %802
        %v804 = vlaneseq
        %v805 = vshrl.u32 %v804, 7
        %v806 = vsub.s32 7, %v805
        %v807 = vrot.slane %v754, %v806
        %809 = vbcast.lane.b32.xlu0 %v807, 256
        %v810 = vpop.permute.xlu0 %809
        %vm811 = vcmask 244736
        %v813 = vsel %vm811, %v746, 0
        %vm815 = vcmask 1046528
        %v817 = vsel %vm815, %v731, 0
        %819 = vmatprep.subr.bf16.mxu0 0
        %820 = vmatpush1.bf16.msra.mxu0 %v730
        %821 = vmatprep.subr.bf16.mxu0 0
        %822 = vmatpush1.bf16.msra.mxu0 %v817
        %823 = vmatprep.subr.bf16.mxu0 0
        %824 = vmatpush1.bf16.msra.mxu0 0
        %825 = vmatprep.subr.bf16.mxu0 0
        %826 = vmatpush1.bf16.msra.mxu0 0
        %827 = vmatprep.subr.bf16.mxu0 0
        %828 = vmatpush1.bf16.msra.mxu0 0
        %829 = vmatprep.subr.bf16.mxu0 0
        %830 = vmatpush1.bf16.msra.mxu0 0
        %831 = vmatprep.subr.bf16.mxu0 0
        %832 = vmatpush1.bf16.msra.mxu0 0
        %833 = vmatprep.subr.bf16.mxu0 0
        %834 = vmatpush1.bf16.msra.mxu0 0
        %835 = vmatprep.subr.bf16.mxu0 0
        %836 = vmatpush1.bf16.msra.mxu0 0
        %837 = vmatprep.subr.bf16.mxu0 0
        %838 = vmatpush1.bf16.msra.mxu0 0
        %839 = vmatprep.subr.bf16.mxu0 0
        %840 = vmatpush1.bf16.msra.mxu0 0
        %841 = vmatprep.subr.bf16.mxu0 0
        %842 = vmatpush1.bf16.msra.mxu0 0
        %843 = vmatprep.subr.bf16.mxu0 0
        %844 = vmatpush1.bf16.msra.mxu0 0
        %845 = vmatprep.subr.bf16.mxu0 0
        %846 = vmatpush1.bf16.msra.mxu0 0
        %847 = vmatprep.subr.bf16.mxu0 0
        %848 = vmatpush1.bf16.msra.mxu0 0
        %849 = vmatprep.subr.bf16.mxu0 0
        %850 = vmatpush1.bf16.msra.mxu0 0
        %851 = vmatprep.mubr.bf16.mxu0 0
        %852 = vmatmul.mubr.bf16.gmra.mrb[0].mxu0 %v813
        %v853 = vpop.f32.mrb[0].mxu0
        %v854 = vadd.f32 %v761, %v853
        %v855 = vpop.f32.mrb[0].mxu0
        %v856 = vpop.f32.mrb[0].mxu0
        %v857 = vpop.f32.mrb[0].mxu0
        %858 = vdwg.mxu0
        %v860 = vsel %vm811, %v747, 0
        %v863 = vsel %vm815, %v733, 0
        %865 = vmatprep.subr.bf16.mxu0 0
        %866 = vmatpush1.bf16.msra.mxu0 %v732
        %867 = vmatprep.subr.bf16.mxu0 0
        %868 = vmatpush1.bf16.msra.mxu0 %v863
        %869 = vmatprep.subr.bf16.mxu0 0
        %870 = vmatpush1.bf16.msra.mxu0 0
        %871 = vmatprep.subr.bf16.mxu0 0
        %872 = vmatpush1.bf16.msra.mxu0 0
        %873 = vmatprep.subr.bf16.mxu0 0
        %874 = vmatpush1.bf16.msra.mxu0 0
        %875 = vmatprep.subr.bf16.mxu0 0
        %876 = vmatpush1.bf16.msra.mxu0 0
        %877 = vmatprep.subr.bf16.mxu0 0
        %878 = vmatpush1.bf16.msra.mxu0 0
        %879 = vmatprep.subr.bf16.mxu0 0
        %880 = vmatpush1.bf16.msra.mxu0 0
        %881 = vmatprep.subr.bf16.mxu0 0
        %882 = vmatpush1.bf16.msra.mxu0 0
        %883 = vmatprep.subr.bf16.mxu0 0
        %884 = vmatpush1.bf16.msra.mxu0 0
        %885 = vmatprep.subr.bf16.mxu0 0
        %886 = vmatpush1.bf16.msra.mxu0 0
        %887 = vmatprep.subr.bf16.mxu0 0
        %888 = vmatpush1.bf16.msra.mxu0 0
        %889 = vmatprep.subr.bf16.mxu0 0
        %890 = vmatpush1.bf16.msra.mxu0 0
        %891 = vmatprep.subr.bf16.mxu0 0
        %892 = vmatpush1.bf16.msra.mxu0 0
        %893 = vmatprep.subr.bf16.mxu0 0
        %894 = vmatpush1.bf16.msra.mxu0 0
        %895 = vmatprep.subr.bf16.mxu0 0
        %896 = vmatpush1.bf16.msra.mxu0 0
        %897 = vmatprep.mubr.bf16.mxu0 0
        %898 = vmatmul.mubr.bf16.gmra.mrb[0].mxu0 %v860
        %v899 = vpop.f32.mrb[0].mxu0
        %v900 = vadd.f32 %v768, %v899
        %v901 = vpop.f32.mrb[0].mxu0
        %v902 = vpop.f32.mrb[0].mxu0
        %v903 = vpop.f32.mrb[0].mxu0
        %904 = vdwg.mxu0
        %v906 = vsel %vm811, %v748, 0
        %v909 = vsel %vm815, %v735, 0
        %911 = vmatprep.subr.bf16.mxu0 0
        %912 = vmatpush1.bf16.msra.mxu0 %v734
        %913 = vmatprep.subr.bf16.mxu0 0
        %914 = vmatpush1.bf16.msra.mxu0 %v909
        %915 = vmatprep.subr.bf16.mxu0 0
        %916 = vmatpush1.bf16.msra.mxu0 0
        %917 = vmatprep.subr.bf16.mxu0 0
        %918 = vmatpush1.bf16.msra.mxu0 0
        %919 = vmatprep.subr.bf16.mxu0 0
        %920 = vmatpush1.bf16.msra.mxu0 0
        %921 = vmatprep.subr.bf16.mxu0 0
        %922 = vmatpush1.bf16.msra.mxu0 0
        %923 = vmatprep.subr.bf16.mxu0 0
        %924 = vmatpush1.bf16.msra.mxu0 0
        %925 = vmatprep.subr.bf16.mxu0 0
        %926 = vmatpush1.bf16.msra.mxu0 0
        %927 = vmatprep.subr.bf16.mxu0 0
        %928 = vmatpush1.bf16.msra.mxu0 0
        %929 = vmatprep.subr.bf16.mxu0 0
        %930 = vmatpush1.bf16.msra.mxu0 0
        %931 = vmatprep.subr.bf16.mxu0 0
        %932 = vmatpush1.bf16.msra.mxu0 0
        %933 = vmatprep.subr.bf16.mxu0 0
        %934 = vmatpush1.bf16.msra.mxu0 0
        %935 = vmatprep.subr.bf16.mxu0 0
        %936 = vmatpush1.bf16.msra.mxu0 0
        %937 = vmatprep.subr.bf16.mxu0 0
        %938 = vmatpush1.bf16.msra.mxu0 0
        %939 = vmatprep.subr.bf16.mxu0 0
        %940 = vmatpush1.bf16.msra.mxu0 0
        %941 = vmatprep.subr.bf16.mxu0 0
        %942 = vmatpush1.bf16.msra.mxu0 0
        %943 = vmatprep.mubr.bf16.mxu0 0
        %944 = vmatmul.mubr.bf16.gmra.mrb[0].mxu0 %v906
        %v945 = vpop.f32.mrb[0].mxu0
        %v946 = vadd.f32 %v775, %v945
        %v947 = vpop.f32.mrb[0].mxu0
        %v948 = vpop.f32.mrb[0].mxu0
        %v949 = vpop.f32.mrb[0].mxu0
        %950 = vdwg.mxu0
        %v952 = vsel %vm811, %v749, 0
        %v955 = vsel %vm815, %v737, 0
        %957 = vmatprep.subr.bf16.mxu0 0
        %958 = vmatpush1.bf16.msra.mxu0 %v736
        %959 = vmatprep.subr.bf16.mxu0 0
        %960 = vmatpush1.bf16.msra.mxu0 %v955
        %961 = vmatprep.subr.bf16.mxu0 0
        %962 = vmatpush1.bf16.msra.mxu0 0
        %963 = vmatprep.subr.bf16.mxu0 0
        %964 = vmatpush1.bf16.msra.mxu0 0
        %965 = vmatprep.subr.bf16.mxu0 0
        %966 = vmatpush1.bf16.msra.mxu0 0
        %967 = vmatprep.subr.bf16.mxu0 0
        %968 = vmatpush1.bf16.msra.mxu0 0
        %969 = vmatprep.subr.bf16.mxu0 0
        %970 = vmatpush1.bf16.msra.mxu0 0
        %971 = vmatprep.subr.bf16.mxu0 0
        %972 = vmatpush1.bf16.msra.mxu0 0
        %973 = vmatprep.subr.bf16.mxu0 0
        %974 = vmatpush1.bf16.msra.mxu0 0
        %975 = vmatprep.subr.bf16.mxu0 0
        %976 = vmatpush1.bf16.msra.mxu0 0
        %977 = vmatprep.subr.bf16.mxu0 0
        %978 = vmatpush1.bf16.msra.mxu0 0
        %979 = vmatprep.subr.bf16.mxu0 0
        %980 = vmatpush1.bf16.msra.mxu0 0
        %981 = vmatprep.subr.bf16.mxu0 0
        %982 = vmatpush1.bf16.msra.mxu0 0
        %983 = vmatprep.subr.bf16.mxu0 0
        %984 = vmatpush1.bf16.msra.mxu0 0
        %985 = vmatprep.subr.bf16.mxu0 0
        %986 = vmatpush1.bf16.msra.mxu0 0
        %987 = vmatprep.subr.bf16.mxu0 0
        %988 = vmatpush1.bf16.msra.mxu0 0
        %989 = vmatprep.mubr.bf16.mxu0 0
        %990 = vmatmul.mubr.bf16.gmra.mrb[0].mxu0 %v952
        %v991 = vpop.f32.mrb[0].mxu0
        %v992 = vadd.f32 %v782, %v991
        %v993 = vpop.f32.mrb[0].mxu0
        %v994 = vpop.f32.mrb[0].mxu0
        %v995 = vpop.f32.mrb[0].mxu0
        %996 = vdwg.mxu0
        %v998 = vsel %vm811, %v750, 0
        %v1001 = vsel %vm815, %v739, 0
        %1003 = vmatprep.subr.bf16.mxu0 0
        %1004 = vmatpush1.bf16.msra.mxu0 %v738
        %1005 = vmatprep.subr.bf16.mxu0 0
        %1006 = vmatpush1.bf16.msra.mxu0 %v1001
        %1007 = vmatprep.subr.bf16.mxu0 0
        %1008 = vmatpush1.bf16.msra.mxu0 0
        %1009 = vmatprep.subr.bf16.mxu0 0
        %1010 = vmatpush1.bf16.msra.mxu0 0
        %1011 = vmatprep.subr.bf16.mxu0 0
        %1012 = vmatpush1.bf16.msra.mxu0 0
        %1013 = vmatprep.subr.bf16.mxu0 0
        %1014 = vmatpush1.bf16.msra.mxu0 0
        %1015 = vmatprep.subr.bf16.mxu0 0
        %1016 = vmatpush1.bf16.msra.mxu0 0
        %1017 = vmatprep.subr.bf16.mxu0 0
        %1018 = vmatpush1.bf16.msra.mxu0 0
        %1019 = vmatprep.subr.bf16.mxu0 0
        %1020 = vmatpush1.bf16.msra.mxu0 0
        %1021 = vmatprep.subr.bf16.mxu0 0
        %1022 = vmatpush1.bf16.msra.mxu0 0
        %1023 = vmatprep.subr.bf16.mxu0 0
        %1024 = vmatpush1.bf16.msra.mxu0 0
        %1025 = vmatprep.subr.bf16.mxu0 0
        %1026 = vmatpush1.bf16.msra.mxu0 0
        %1027 = vmatprep.subr.bf16.mxu0 0
        %1028 = vmatpush1.bf16.msra.mxu0 0
        %1029 = vmatprep.subr.bf16.mxu0 0
        %1030 = vmatpush1.bf16.msra.mxu0 0
        %1031 = vmatprep.subr.bf16.mxu0 0
        %1032 = vmatpush1.bf16.msra.mxu0 0
        %1033 = vmatprep.subr.bf16.mxu0 0
        %1034 = vmatpush1.bf16.msra.mxu0 0
        %1035 = vmatprep.mubr.bf16.mxu0 0
        %1036 = vmatmul.mubr.bf16.gmra.mrb[0].mxu0 %v998
        %v1037 = vpop.f32.mrb[0].mxu0
        %v1038 = vadd.f32 %v789, %v1037
        %v1039 = vpop.f32.mrb[0].mxu0
        %v1040 = vpop.f32.mrb[0].mxu0
        %v1041 = vpop.f32.mrb[0].mxu0
        %1042 = vdwg.mxu0
        %v1044 = vsel %vm811, %v751, 0
        %v1047 = vsel %vm815, %v741, 0
        %1049 = vmatprep.subr.bf16.mxu0 0
        %1050 = vmatpush1.bf16.msra.mxu0 %v740
        %1051 = vmatprep.subr.bf16.mxu0 0
        %1052 = vmatpush1.bf16.msra.mxu0 %v1047
        %1053 = vmatprep.subr.bf16.mxu0 0
        %1054 = vmatpush1.bf16.msra.mxu0 0
        %1055 = vmatprep.subr.bf16.mxu0 0
        %1056 = vmatpush1.bf16.msra.mxu0 0
        %1057 = vmatprep.subr.bf16.mxu0 0
        %1058 = vmatpush1.bf16.msra.mxu0 0
        %1059 = vmatprep.subr.bf16.mxu0 0
        %1060 = vmatpush1.bf16.msra.mxu0 0
        %1061 = vmatprep.subr.bf16.mxu0 0
        %1062 = vmatpush1.bf16.msra.mxu0 0
        %1063 = vmatprep.subr.bf16.mxu0 0
        %1064 = vmatpush1.bf16.msra.mxu0 0
        %1065 = vmatprep.subr.bf16.mxu0 0
        %1066 = vmatpush1.bf16.msra.mxu0 0
        %1067 = vmatprep.subr.bf16.mxu0 0
        %1068 = vmatpush1.bf16.msra.mxu0 0
        %1069 = vmatprep.subr.bf16.mxu0 0
        %1070 = vmatpush1.bf16.msra.mxu0 0
        %1071 = vmatprep.subr.bf16.mxu0 0
        %1072 = vmatpush1.bf16.msra.mxu0 0
        %1073 = vmatprep.subr.bf16.mxu0 0
        %1074 = vmatpush1.bf16.msra.mxu0 0
        %1075 = vmatprep.subr.bf16.mxu0 0
        %1076 = vmatpush1.bf16.msra.mxu0 0
        %1077 = vmatprep.subr.bf16.mxu0 0
        %1078 = vmatpush1.bf16.msra.mxu0 0
        %1079 = vmatprep.subr.bf16.mxu0 0
        %1080 = vmatpush1.bf16.msra.mxu0 0
        %1081 = vmatprep.mubr.bf16.mxu0 0
        %1082 = vmatmul.mubr.bf16.gmra.mrb[0].mxu0 %v1044
        %v1083 = vpop.f32.mrb[0].mxu0
        %v1084 = vadd.f32 %v796, %v1083
        %v1085 = vpop.f32.mrb[0].mxu0
        %v1086 = vpop.f32.mrb[0].mxu0
        %v1087 = vpop.f32.mrb[0].mxu0
        %1088 = vdwg.mxu0
        %v1090 = vsel %vm811, %v752, 0
        %v1093 = vsel %vm815, %v743, 0
        %1095 = vmatprep.subr.bf16.mxu0 0
        %1096 = vmatpush1.bf16.msra.mxu0 %v742
        %1097 = vmatprep.subr.bf16.mxu0 0
        %1098 = vmatpush1.bf16.msra.mxu0 %v1093
        %1099 = vmatprep.subr.bf16.mxu0 0
        %1100 = vmatpush1.bf16.msra.mxu0 0
        %1101 = vmatprep.subr.bf16.mxu0 0
        %1102 = vmatpush1.bf16.msra.mxu0 0
        %1103 = vmatprep.subr.bf16.mxu0 0
        %1104 = vmatpush1.bf16.msra.mxu0 0
        %1105 = vmatprep.subr.bf16.mxu0 0
        %1106 = vmatpush1.bf16.msra.mxu0 0
        %1107 = vmatprep.subr.bf16.mxu0 0
        %1108 = vmatpush1.bf16.msra.mxu0 0
        %1109 = vmatprep.subr.bf16.mxu0 0
        %1110 = vmatpush1.bf16.msra.mxu0 0
        %1111 = vmatprep.subr.bf16.mxu0 0
        %1112 = vmatpush1.bf16.msra.mxu0 0
        %1113 = vmatprep.subr.bf16.mxu0 0
        %1114 = vmatpush1.bf16.msra.mxu0 0
        %1115 = vmatprep.subr.bf16.mxu0 0
        %1116 = vmatpush1.bf16.msra.mxu0 0
        %1117 = vmatprep.subr.bf16.mxu0 0
        %1118 = vmatpush1.bf16.msra.mxu0 0
        %1119 = vmatprep.subr.bf16.mxu0 0
        %1120 = vmatpush1.bf16.msra.mxu0 0
        %1121 = vmatprep.subr.bf16.mxu0 0
        %1122 = vmatpush1.bf16.msra.mxu0 0
        %1123 = vmatprep.subr.bf16.mxu0 0
        %1124 = vmatpush1.bf16.msra.mxu0 0
        %1125 = vmatprep.subr.bf16.mxu0 0
        %1126 = vmatpush1.bf16.msra.mxu0 0
        %1127 = vmatprep.mubr.bf16.mxu0 0
        %1128 = vmatmul.mubr.bf16.gmra.mrb[0].mxu0 %v1090
        %v1129 = vpop.f32.mrb[0].mxu0
        %v1130 = vadd.f32 %v803, %v1129
        %v1131 = vpop.f32.mrb[0].mxu0
        %v1132 = vpop.f32.mrb[0].mxu0
        %v1133 = vpop.f32.mrb[0].mxu0
        %1134 = vdwg.mxu0
        %v1136 = vsel %vm811, %v753, 0
        %v1139 = vsel %vm815, %v745, 0
        %1141 = vmatprep.subr.bf16.mxu0 0
        %1142 = vmatpush1.bf16.msra.mxu0 %v744
        %1143 = vmatprep.subr.bf16.mxu0 0
        %1144 = vmatpush1.bf16.msra.mxu0 %v1139
        %1145 = vmatprep.subr.bf16.mxu0 0
        %1146 = vmatpush1.bf16.msra.mxu0 0
        %1147 = vmatprep.subr.bf16.mxu0 0
        %1148 = vmatpush1.bf16.msra.mxu0 0
        %1149 = vmatprep.subr.bf16.mxu0 0
        %1150 = vmatpush1.bf16.msra.mxu0 0
        %1151 = vmatprep.subr.bf16.mxu0 0
        %1152 = vmatpush1.bf16.msra.mxu0 0
        %1153 = vmatprep.subr.bf16.mxu0 0
        %1154 = vmatpush1.bf16.msra.mxu0 0
        %1155 = vmatprep.subr.bf16.mxu0 0
        %1156 = vmatpush1.bf16.msra.mxu0 0
        %1157 = vmatprep.subr.bf16.mxu0 0
        %1158 = vmatpush1.bf16.msra.mxu0 0
        %1159 = vmatprep.subr.bf16.mxu0 0
        %1160 = vmatpush1.bf16.msra.mxu0 0
        %1161 = vmatprep.subr.bf16.mxu0 0
        %1162 = vmatpush1.bf16.msra.mxu0 0
        %1163 = vmatprep.subr.bf16.mxu0 0
        %1164 = vmatpush1.bf16.msra.mxu0 0
        %1165 = vmatprep.subr.bf16.mxu0 0
        %1166 = vmatpush1.bf16.msra.mxu0 0
        %1167 = vmatprep.subr.bf16.mxu0 0
        %1168 = vmatpush1.bf16.msra.mxu0 0
        %1169 = vmatprep.subr.bf16.mxu0 0
        %1170 = vmatpush1.bf16.msra.mxu0 0
        %1171 = vmatprep.subr.bf16.mxu0 0
        %1172 = vmatpush1.bf16.msra.mxu0 0
        %1173 = vmatprep.mubr.bf16.mxu0 0
        %1174 = vmatmul.mubr.bf16.gmra.mrb[0].mxu0 %v1136
        %v1175 = vpop.f32.mrb[0].mxu0
        %v1176 = vadd.f32 %v810, %v1175
        %v1177 = vpop.f32.mrb[0].mxu0
        %v1178 = vpop.f32.mrb[0].mxu0
        %v1179 = vpop.f32.mrb[0].mxu0
        %1180 = vdwg.mxu0
        %v1181 = vmax.f32 %v854, 0.0
        %v1182 = vmax.f32 %v900, 0.0
        %v1183 = vmax.f32 %v946, 0.0
        %v1184 = vmax.f32 %v992, 0.0
        %v1185 = vmax.f32 %v1038, 0.0
        %v1186 = vmax.f32 %v1084, 0.0
        %v1187 = vmax.f32 %v1130, 0.0
        %v1188 = vmax.f32 %v1176, 0.0
        %1189 = vrot.lane.b32.xlu0 %v1181, 1
        %v1190 = vpop.permute.xlu0 %1189
        %1191 = vrot.lane.b32.xlu0 %v1182, 1
        %v1192 = vpop.permute.xlu0 %1191
        %1193 = vrot.lane.b32.xlu0 %v1183, 1
        %v1194 = vpop.permute.xlu0 %1193
        %1195 = vrot.lane.b32.xlu0 %v1184, 1
        %v1196 = vpop.permute.xlu0 %1195
        %1197 = vrot.lane.b32.xlu0 %v1185, 1
        %v1198 = vpop.permute.xlu0 %1197
        %1199 = vrot.lane.b32.xlu0 %v1186, 1
        %v1200 = vpop.permute.xlu0 %1199
        %1201 = vrot.lane.b32.xlu0 %v1187, 1
        %v1202 = vpop.permute.xlu0 %1201
        %1203 = vrot.lane.b32.xlu0 %v1188, 1
        %v1204 = vpop.permute.xlu0 %1203
        %v1205 = vsel %vm533, %v1190, 0.0
        %v1206 = vsel %vm533, %v1192, 0.0
        %v1207 = vsel %vm533, %v1194, 0.0
        %v1208 = vsel %vm533, %v1196, 0.0
        %v1209 = vsel %vm533, %v1198, 0.0
        %v1210 = vsel %vm533, %v1200, 0.0
        %v1211 = vsel %vm533, %v1202, 0.0
        %v1212 = vsel %vm533, %v1204, 0.0
        %1213 = vrot.lane.b32.xlu0 %v1181, 127
        %v1214 = vpop.permute.xlu0 %1213
        %1215 = vrot.lane.b32.xlu0 %v1182, 127
        %v1216 = vpop.permute.xlu0 %1215
        %1217 = vrot.lane.b32.xlu0 %v1183, 127
        %v1218 = vpop.permute.xlu0 %1217
        %1219 = vrot.lane.b32.xlu0 %v1184, 127
        %v1220 = vpop.permute.xlu0 %1219
        %1221 = vrot.lane.b32.xlu0 %v1185, 127
        %v1222 = vpop.permute.xlu0 %1221
        %1223 = vrot.lane.b32.xlu0 %v1186, 127
        %v1224 = vpop.permute.xlu0 %1223
        %1225 = vrot.lane.b32.xlu0 %v1187, 127
        %v1226 = vpop.permute.xlu0 %1225
        %1227 = vrot.lane.b32.xlu0 %v1188, 127
        %v1228 = vpop.permute.xlu0 %1227
        %v1229 = vsel %vm583, %v1214, 0.0
        %v1230 = vsel %vm583, %v1216, 0.0
        %v1231 = vsel %vm583, %v1218, 0.0
        %v1232 = vsel %vm583, %v1220, 0.0
        %v1233 = vsel %vm583, %v1222, 0.0
        %v1234 = vsel %vm583, %v1224, 0.0
        %v1235 = vsel %vm583, %v1226, 0.0
        %v1236 = vsel %vm583, %v1228, 0.0
        %v1237 = vpack.c.bf16 %v1181, %v1205
        %v1238 = vpack.c.bf16 %v1229, %v1229
        %v1239 = vpack.c.bf16 %v1182, %v1206
        %v1240 = vpack.c.bf16 %v1230, %v1230
        %v1241 = vpack.c.bf16 %v1183, %v1207
        %v1242 = vpack.c.bf16 %v1231, %v1231
        %v1243 = vpack.c.bf16 %v1184, %v1208
        %v1244 = vpack.c.bf16 %v1232, %v1232
        %v1245 = vpack.c.bf16 %v1185, %v1209
        %v1246 = vpack.c.bf16 %v1233, %v1233
        %v1247 = vpack.c.bf16 %v1186, %v1210
        %v1248 = vpack.c.bf16 %v1234, %v1234
        %v1249 = vpack.c.bf16 %v1187, %v1211
        %v1250 = vpack.c.bf16 %v1235, %v1235
        %v1251 = vpack.c.bf16 %v1188, %v1212
        %v1252 = vpack.c.bf16 %v1236, %v1236
        %v1253 = vld [vmem:[%s452] sm:$0xf]
        %v1254 = vld [vmem:[%s452 + $0x4] sm:$0xf]
        %v1255 = vld [vmem:[%s452 + $0x8] sm:$0xf]
        %v1256 = vld [vmem:[%s452 + $0xc] sm:$0xf]
        %v1257 = vld [vmem:[%s452 + $0x10] sm:$0xf]
        %v1258 = vld [vmem:[%s452 + $0x14] sm:$0xf]
        %v1259 = vld [vmem:[%s452 + $0x18] sm:$0xf]
        %v1260 = vld [vmem:[%s452 + $0x1c] sm:$0xf]
        %v1261 = vld [vmem:[%s457] sm:$0xff]
        %v1262 = vlaneseq
        %v1263 = vshrl.u32 %v1262, 7
        %v1264 = vsub.s32 0, %v1263
        %v1265 = vrot.slane %v1261, %v1264
        %1267 = vbcast.lane.b32.xlu0 %v1265, 256
        %v1268 = vpop.permute.xlu0 %1267
        %v1269 = vlaneseq
        %v1270 = vshrl.u32 %v1269, 7
        %v1271 = vsub.s32 1, %v1270
        %v1272 = vrot.slane %v1261, %v1271
        %1274 = vbcast.lane.b32.xlu0 %v1272, 256
        %v1275 = vpop.permute.xlu0 %1274
        %v1276 = vlaneseq
        %v1277 = vshrl.u32 %v1276, 7
        %v1278 = vsub.s32 2, %v1277
        %v1279 = vrot.slane %v1261, %v1278
        %1281 = vbcast.lane.b32.xlu0 %v1279, 256
        %v1282 = vpop.permute.xlu0 %1281
        %v1283 = vlaneseq
        %v1284 = vshrl.u32 %v1283, 7
        %v1285 = vsub.s32 3, %v1284
        %v1286 = vrot.slane %v1261, %v1285
        %1288 = vbcast.lane.b32.xlu0 %v1286, 256
        %v1289 = vpop.permute.xlu0 %1288
        %v1290 = vlaneseq
        %v1291 = vshrl.u32 %v1290, 7
        %v1292 = vsub.s32 4, %v1291
        %v1293 = vrot.slane %v1261, %v1292
        %1295 = vbcast.lane.b32.xlu0 %v1293, 256
        %v1296 = vpop.permute.xlu0 %1295
        %v1297 = vlaneseq
        %v1298 = vshrl.u32 %v1297, 7
        %v1299 = vsub.s32 5, %v1298
        %v1300 = vrot.slane %v1261, %v1299
        %1302 = vbcast.lane.b32.xlu0 %v1300, 256
        %v1303 = vpop.permute.xlu0 %1302
        %v1304 = vlaneseq
        %v1305 = vshrl.u32 %v1304, 7
        %v1306 = vsub.s32 6, %v1305
        %v1307 = vrot.slane %v1261, %v1306
        %1309 = vbcast.lane.b32.xlu0 %v1307, 256
        %v1310 = vpop.permute.xlu0 %1309
        %v1311 = vlaneseq
        %v1312 = vshrl.u32 %v1311, 7
        %v1313 = vsub.s32 7, %v1312
        %v1314 = vrot.slane %v1261, %v1313
        %1316 = vbcast.lane.b32.xlu0 %v1314, 256
        %v1317 = vpop.permute.xlu0 %1316
        %vm1318 = vcmask 195584
        %v1320 = vsel %vm1318, %v1253, 0
        %v1323 = vsel %vm673, %v1238, 0
        %1325 = vmatprep.subr.bf16.mxu0 0
        %1326 = vmatpush1.bf16.msra.mxu0 %v1237
        %1327 = vmatprep.subr.bf16.mxu0 0
        %1328 = vmatpush1.bf16.msra.mxu0 %v1323
        %1329 = vmatprep.subr.bf16.mxu0 0
        %1330 = vmatpush1.bf16.msra.mxu0 0
        %1331 = vmatprep.subr.bf16.mxu0 0
        %1332 = vmatpush1.bf16.msra.mxu0 0
        %1333 = vmatprep.subr.bf16.mxu0 0
        %1334 = vmatpush1.bf16.msra.mxu0 0
        %1335 = vmatprep.subr.bf16.mxu0 0
        %1336 = vmatpush1.bf16.msra.mxu0 0
        %1337 = vmatprep.subr.bf16.mxu0 0
        %1338 = vmatpush1.bf16.msra.mxu0 0
        %1339 = vmatprep.subr.bf16.mxu0 0
        %1340 = vmatpush1.bf16.msra.mxu0 0
        %1341 = vmatprep.subr.bf16.mxu0 0
        %1342 = vmatpush1.bf16.msra.mxu0 0
        %1343 = vmatprep.subr.bf16.mxu0 0
        %1344 = vmatpush1.bf16.msra.mxu0 0
        %1345 = vmatprep.subr.bf16.mxu0 0
        %1346 = vmatpush1.bf16.msra.mxu0 0
        %1347 = vmatprep.subr.bf16.mxu0 0
        %1348 = vmatpush1.bf16.msra.mxu0 0
        %1349 = vmatprep.subr.bf16.mxu0 0
        %1350 = vmatpush1.bf16.msra.mxu0 0
        %1351 = vmatprep.subr.bf16.mxu0 0
        %1352 = vmatpush1.bf16.msra.mxu0 0
        %1353 = vmatprep.subr.bf16.mxu0 0
        %1354 = vmatpush1.bf16.msra.mxu0 0
        %1355 = vmatprep.subr.bf16.mxu0 0
        %1356 = vmatpush1.bf16.msra.mxu0 0
        %1357 = vmatprep.mubr.bf16.mxu0 0
        %1358 = vmatmul.mubr.bf16.gmra.mrb[0].mxu0 %v1320
        %v1359 = vpop.f32.mrb[0].mxu0
        %v1360 = vadd.f32 %v1268, %v1359
        %v1361 = vpop.f32.mrb[0].mxu0
        %v1362 = vpop.f32.mrb[0].mxu0
        %v1363 = vpop.f32.mrb[0].mxu0
        %1364 = vdwg.mxu0
        %v1366 = vsel %vm1318, %v1254, 0
        %v1369 = vsel %vm673, %v1240, 0
        %1371 = vmatprep.subr.bf16.mxu0 0
        %1372 = vmatpush1.bf16.msra.mxu0 %v1239
        %1373 = vmatprep.subr.bf16.mxu0 0
        %1374 = vmatpush1.bf16.msra.mxu0 %v1369
        %1375 = vmatprep.subr.bf16.mxu0 0
        %1376 = vmatpush1.bf16.msra.mxu0 0
        %1377 = vmatprep.subr.bf16.mxu0 0
        %1378 = vmatpush1.bf16.msra.mxu0 0
        %1379 = vmatprep.subr.bf16.mxu0 0
        %1380 = vmatpush1.bf16.msra.mxu0 0
        %1381 = vmatprep.subr.bf16.mxu0 0
        %1382 = vmatpush1.bf16.msra.mxu0 0
        %1383 = vmatprep.subr.bf16.mxu0 0
        %1384 = vmatpush1.bf16.msra.mxu0 0
        %1385 = vmatprep.subr.bf16.mxu0 0
        %1386 = vmatpush1.bf16.msra.mxu0 0
        %1387 = vmatprep.subr.bf16.mxu0 0
        %1388 = vmatpush1.bf16.msra.mxu0 0
        %1389 = vmatprep.subr.bf16.mxu0 0
        %1390 = vmatpush1.bf16.msra.mxu0 0
        %1391 = vmatprep.subr.bf16.mxu0 0
        %1392 = vmatpush1.bf16.msra.mxu0 0
        %1393 = vmatprep.subr.bf16.mxu0 0
        %1394 = vmatpush1.bf16.msra.mxu0 0
        %1395 = vmatprep.subr.bf16.mxu0 0
        %1396 = vmatpush1.bf16.msra.mxu0 0
        %1397 = vmatprep.subr.bf16.mxu0 0
        %1398 = vmatpush1.bf16.msra.mxu0 0
        %1399 = vmatprep.subr.bf16.mxu0 0
        %1400 = vmatpush1.bf16.msra.mxu0 0
        %1401 = vmatprep.subr.bf16.mxu0 0
        %1402 = vmatpush1.bf16.msra.mxu0 0
        %1403 = vmatprep.mubr.bf16.mxu0 0
        %1404 = vmatmul.mubr.bf16.gmra.mrb[0].mxu0 %v1366
        %v1405 = vpop.f32.mrb[0].mxu0
        %v1406 = vadd.f32 %v1275, %v1405
        %v1407 = vpop.f32.mrb[0].mxu0
        %v1408 = vpop.f32.mrb[0].mxu0
        %v1409 = vpop.f32.mrb[0].mxu0
        %1410 = vdwg.mxu0
        %v1412 = vsel %vm1318, %v1255, 0
        %v1415 = vsel %vm673, %v1242, 0
        %1417 = vmatprep.subr.bf16.mxu0 0
        %1418 = vmatpush1.bf16.msra.mxu0 %v1241
        %1419 = vmatprep.subr.bf16.mxu0 0
        %1420 = vmatpush1.bf16.msra.mxu0 %v1415
        %1421 = vmatprep.subr.bf16.mxu0 0
        %1422 = vmatpush1.bf16.msra.mxu0 0
        %1423 = vmatprep.subr.bf16.mxu0 0
        %1424 = vmatpush1.bf16.msra.mxu0 0
        %1425 = vmatprep.subr.bf16.mxu0 0
        %1426 = vmatpush1.bf16.msra.mxu0 0
        %1427 = vmatprep.subr.bf16.mxu0 0
        %1428 = vmatpush1.bf16.msra.mxu0 0
        %1429 = vmatprep.subr.bf16.mxu0 0
        %1430 = vmatpush1.bf16.msra.mxu0 0
        %1431 = vmatprep.subr.bf16.mxu0 0
        %1432 = vmatpush1.bf16.msra.mxu0 0
        %1433 = vmatprep.subr.bf16.mxu0 0
        %1434 = vmatpush1.bf16.msra.mxu0 0
        %1435 = vmatprep.subr.bf16.mxu0 0
        %1436 = vmatpush1.bf16.msra.mxu0 0
        %1437 = vmatprep.subr.bf16.mxu0 0
        %1438 = vmatpush1.bf16.msra.mxu0 0
        %1439 = vmatprep.subr.bf16.mxu0 0
        %1440 = vmatpush1.bf16.msra.mxu0 0
        %1441 = vmatprep.subr.bf16.mxu0 0
        %1442 = vmatpush1.bf16.msra.mxu0 0
        %1443 = vmatprep.subr.bf16.mxu0 0
        %1444 = vmatpush1.bf16.msra.mxu0 0
        %1445 = vmatprep.subr.bf16.mxu0 0
        %1446 = vmatpush1.bf16.msra.mxu0 0
        %1447 = vmatprep.subr.bf16.mxu0 0
        %1448 = vmatpush1.bf16.msra.mxu0 0
        %1449 = vmatprep.mubr.bf16.mxu0 0
        %1450 = vmatmul.mubr.bf16.gmra.mrb[0].mxu0 %v1412
        %v1451 = vpop.f32.mrb[0].mxu0
        %v1452 = vadd.f32 %v1282, %v1451
        %v1453 = vpop.f32.mrb[0].mxu0
        %v1454 = vpop.f32.mrb[0].mxu0
        %v1455 = vpop.f32.mrb[0].mxu0
        %1456 = vdwg.mxu0
        %v1458 = vsel %vm1318, %v1256, 0
        %v1461 = vsel %vm673, %v1244, 0
        %1463 = vmatprep.subr.bf16.mxu0 0
        %1464 = vmatpush1.bf16.msra.mxu0 %v1243
        %1465 = vmatprep.subr.bf16.mxu0 0
        %1466 = vmatpush1.bf16.msra.mxu0 %v1461
        %1467 = vmatprep.subr.bf16.mxu0 0
        %1468 = vmatpush1.bf16.msra.mxu0 0
        %1469 = vmatprep.subr.bf16.mxu0 0
        %1470 = vmatpush1.bf16.msra.mxu0 0
        %1471 = vmatprep.subr.bf16.mxu0 0
        %1472 = vmatpush1.bf16.msra.mxu0 0
        %1473 = vmatprep.subr.bf16.mxu0 0
        %1474 = vmatpush1.bf16.msra.mxu0 0
        %1475 = vmatprep.subr.bf16.mxu0 0
        %1476 = vmatpush1.bf16.msra.mxu0 0
        %1477 = vmatprep.subr.bf16.mxu0 0
        %1478 = vmatpush1.bf16.msra.mxu0 0
        %1479 = vmatprep.subr.bf16.mxu0 0
        %1480 = vmatpush1.bf16.msra.mxu0 0
        %1481 = vmatprep.subr.bf16.mxu0 0
        %1482 = vmatpush1.bf16.msra.mxu0 0
        %1483 = vmatprep.subr.bf16.mxu0 0
        %1484 = vmatpush1.bf16.msra.mxu0 0
        %1485 = vmatprep.subr.bf16.mxu0 0
        %1486 = vmatpush1.bf16.msra.mxu0 0
        %1487 = vmatprep.subr.bf16.mxu0 0
        %1488 = vmatpush1.bf16.msra.mxu0 0
        %1489 = vmatprep.subr.bf16.mxu0 0
        %1490 = vmatpush1.bf16.msra.mxu0 0
        %1491 = vmatprep.subr.bf16.mxu0 0
        %1492 = vmatpush1.bf16.msra.mxu0 0
        %1493 = vmatprep.subr.bf16.mxu0 0
        %1494 = vmatpush1.bf16.msra.mxu0 0
        %1495 = vmatprep.mubr.bf16.mxu0 0
        %1496 = vmatmul.mubr.bf16.gmra.mrb[0].mxu0 %v1458
        %v1497 = vpop.f32.mrb[0].mxu0
        %v1498 = vadd.f32 %v1289, %v1497
        %v1499 = vpop.f32.mrb[0].mxu0
        %v1500 = vpop.f32.mrb[0].mxu0
        %v1501 = vpop.f32.mrb[0].mxu0
        %1502 = vdwg.mxu0
        %v1504 = vsel %vm1318, %v1257, 0
        %v1507 = vsel %vm673, %v1246, 0
        %1509 = vmatprep.subr.bf16.mxu0 0
        %1510 = vmatpush1.bf16.msra.mxu0 %v1245
        %1511 = vmatprep.subr.bf16.mxu0 0
        %1512 = vmatpush1.bf16.msra.mxu0 %v1507
        %1513 = vmatprep.subr.bf16.mxu0 0
        %1514 = vmatpush1.bf16.msra.mxu0 0
        %1515 = vmatprep.subr.bf16.mxu0 0
        %1516 = vmatpush1.bf16.msra.mxu0 0
        %1517 = vmatprep.subr.bf16.mxu0 0
        %1518 = vmatpush1.bf16.msra.mxu0 0
        %1519 = vmatprep.subr.bf16.mxu0 0
        %1520 = vmatpush1.bf16.msra.mxu0 0
        %1521 = vmatprep.subr.bf16.mxu0 0
        %1522 = vmatpush1.bf16.msra.mxu0 0
        %1523 = vmatprep.subr.bf16.mxu0 0
        %1524 = vmatpush1.bf16.msra.mxu0 0
        %1525 = vmatprep.subr.bf16.mxu0 0
        %1526 = vmatpush1.bf16.msra.mxu0 0
        %1527 = vmatprep.subr.bf16.mxu0 0
        %1528 = vmatpush1.bf16.msra.mxu0 0
        %1529 = vmatprep.subr.bf16.mxu0 0
        %1530 = vmatpush1.bf16.msra.mxu0 0
        %1531 = vmatprep.subr.bf16.mxu0 0
        %1532 = vmatpush1.bf16.msra.mxu0 0
        %1533 = vmatprep.subr.bf16.mxu0 0
        %1534 = vmatpush1.bf16.msra.mxu0 0
        %1535 = vmatprep.subr.bf16.mxu0 0
        %1536 = vmatpush1.bf16.msra.mxu0 0
        %1537 = vmatprep.subr.bf16.mxu0 0
        %1538 = vmatpush1.bf16.msra.mxu0 0
        %1539 = vmatprep.subr.bf16.mxu0 0
        %1540 = vmatpush1.bf16.msra.mxu0 0
        %1541 = vmatprep.mubr.bf16.mxu0 0
        %1542 = vmatmul.mubr.bf16.gmra.mrb[0].mxu0 %v1504
        %v1543 = vpop.f32.mrb[0].mxu0
        %v1544 = vadd.f32 %v1296, %v1543
        %v1545 = vpop.f32.mrb[0].mxu0
        %v1546 = vpop.f32.mrb[0].mxu0
        %v1547 = vpop.f32.mrb[0].mxu0
        %1548 = vdwg.mxu0
        %v1550 = vsel %vm1318, %v1258, 0
        %v1553 = vsel %vm673, %v1248, 0
        %1555 = vmatprep.subr.bf16.mxu0 0
        %1556 = vmatpush1.bf16.msra.mxu0 %v1247
        %1557 = vmatprep.subr.bf16.mxu0 0
        %1558 = vmatpush1.bf16.msra.mxu0 %v1553
        %1559 = vmatprep.subr.bf16.mxu0 0
        %1560 = vmatpush1.bf16.msra.mxu0 0
        %1561 = vmatprep.subr.bf16.mxu0 0
        %1562 = vmatpush1.bf16.msra.mxu0 0
        %1563 = vmatprep.subr.bf16.mxu0 0
        %1564 = vmatpush1.bf16.msra.mxu0 0
        %1565 = vmatprep.subr.bf16.mxu0 0
        %1566 = vmatpush1.bf16.msra.mxu0 0
        %1567 = vmatprep.subr.bf16.mxu0 0
        %1568 = vmatpush1.bf16.msra.mxu0 0
        %1569 = vmatprep.subr.bf16.mxu0 0
        %1570 = vmatpush1.bf16.msra.mxu0 0
        %1571 = vmatprep.subr.bf16.mxu0 0
        %1572 = vmatpush1.bf16.msra.mxu0 0
        %1573 = vmatprep.subr.bf16.mxu0 0
        %1574 = vmatpush1.bf16.msra.mxu0 0
        %1575 = vmatprep.subr.bf16.mxu0 0
        %1576 = vmatpush1.bf16.msra.mxu0 0
        %1577 = vmatprep.subr.bf16.mxu0 0
        %1578 = vmatpush1.bf16.msra.mxu0 0
        %1579 = vmatprep.subr.bf16.mxu0 0
        %1580 = vmatpush1.bf16.msra.mxu0 0
        %1581 = vmatprep.subr.bf16.mxu0 0
        %1582 = vmatpush1.bf16.msra.mxu0 0
        %1583 = vmatprep.subr.bf16.mxu0 0
        %1584 = vmatpush1.bf16.msra.mxu0 0
        %1585 = vmatprep.subr.bf16.mxu0 0
        %1586 = vmatpush1.bf16.msra.mxu0 0
        %1587 = vmatprep.mubr.bf16.mxu0 0
        %1588 = vmatmul.mubr.bf16.gmra.mrb[0].mxu0 %v1550
        %v1589 = vpop.f32.mrb[0].mxu0
        %v1590 = vadd.f32 %v1303, %v1589
        %v1591 = vpop.f32.mrb[0].mxu0
        %v1592 = vpop.f32.mrb[0].mxu0
        %v1593 = vpop.f32.mrb[0].mxu0
        %1594 = vdwg.mxu0
        %v1596 = vsel %vm1318, %v1259, 0
        %v1599 = vsel %vm673, %v1250, 0
        %1601 = vmatprep.subr.bf16.mxu0 0
        %1602 = vmatpush1.bf16.msra.mxu0 %v1249
        %1603 = vmatprep.subr.bf16.mxu0 0
        %1604 = vmatpush1.bf16.msra.mxu0 %v1599
        %1605 = vmatprep.subr.bf16.mxu0 0
        %1606 = vmatpush1.bf16.msra.mxu0 0
        %1607 = vmatprep.subr.bf16.mxu0 0
        %1608 = vmatpush1.bf16.msra.mxu0 0
        %1609 = vmatprep.subr.bf16.mxu0 0
        %1610 = vmatpush1.bf16.msra.mxu0 0
        %1611 = vmatprep.subr.bf16.mxu0 0
        %1612 = vmatpush1.bf16.msra.mxu0 0
        %1613 = vmatprep.subr.bf16.mxu0 0
        %1614 = vmatpush1.bf16.msra.mxu0 0
        %1615 = vmatprep.subr.bf16.mxu0 0
        %1616 = vmatpush1.bf16.msra.mxu0 0
        %1617 = vmatprep.subr.bf16.mxu0 0
        %1618 = vmatpush1.bf16.msra.mxu0 0
        %1619 = vmatprep.subr.bf16.mxu0 0
        %1620 = vmatpush1.bf16.msra.mxu0 0
        %1621 = vmatprep.subr.bf16.mxu0 0
        %1622 = vmatpush1.bf16.msra.mxu0 0
        %1623 = vmatprep.subr.bf16.mxu0 0
        %1624 = vmatpush1.bf16.msra.mxu0 0
        %1625 = vmatprep.subr.bf16.mxu0 0
        %1626 = vmatpush1.bf16.msra.mxu0 0
        %1627 = vmatprep.subr.bf16.mxu0 0
        %1628 = vmatpush1.bf16.msra.mxu0 0
        %1629 = vmatprep.subr.bf16.mxu0 0
        %1630 = vmatpush1.bf16.msra.mxu0 0
        %1631 = vmatprep.subr.bf16.mxu0 0
        %1632 = vmatpush1.bf16.msra.mxu0 0
        %1633 = vmatprep.mubr.bf16.mxu0 0
        %1634 = vmatmul.mubr.bf16.gmra.mrb[0].mxu0 %v1596
        %v1635 = vpop.f32.mrb[0].mxu0
        %v1636 = vadd.f32 %v1310, %v1635
        %v1637 = vpop.f32.mrb[0].mxu0
        %v1638 = vpop.f32.mrb[0].mxu0
        %v1639 = vpop.f32.mrb[0].mxu0
        %1640 = vdwg.mxu0
        %v1642 = vsel %vm1318, %v1260, 0
        %v1645 = vsel %vm673, %v1252, 0
        %1647 = vmatprep.subr.bf16.mxu0 0
        %1648 = vmatpush1.bf16.msra.mxu0 %v1251
        %1649 = vmatprep.subr.bf16.mxu0 0
        %1650 = vmatpush1.bf16.msra.mxu0 %v1645
        %1651 = vmatprep.subr.bf16.mxu0 0
        %1652 = vmatpush1.bf16.msra.mxu0 0
        %1653 = vmatprep.subr.bf16.mxu0 0
        %1654 = vmatpush1.bf16.msra.mxu0 0
        %1655 = vmatprep.subr.bf16.mxu0 0
        %1656 = vmatpush1.bf16.msra.mxu0 0
        %1657 = vmatprep.subr.bf16.mxu0 0
        %1658 = vmatpush1.bf16.msra.mxu0 0
        %1659 = vmatprep.subr.bf16.mxu0 0
        %1660 = vmatpush1.bf16.msra.mxu0 0
        %1661 = vmatprep.subr.bf16.mxu0 0
        %1662 = vmatpush1.bf16.msra.mxu0 0
        %1663 = vmatprep.subr.bf16.mxu0 0
        %1664 = vmatpush1.bf16.msra.mxu0 0
        %1665 = vmatprep.subr.bf16.mxu0 0
        %1666 = vmatpush1.bf16.msra.mxu0 0
        %1667 = vmatprep.subr.bf16.mxu0 0
        %1668 = vmatpush1.bf16.msra.mxu0 0
        %1669 = vmatprep.subr.bf16.mxu0 0
        %1670 = vmatpush1.bf16.msra.mxu0 0
        %1671 = vmatprep.subr.bf16.mxu0 0
        %1672 = vmatpush1.bf16.msra.mxu0 0
        %1673 = vmatprep.subr.bf16.mxu0 0
        %1674 = vmatpush1.bf16.msra.mxu0 0
        %1675 = vmatprep.subr.bf16.mxu0 0
        %1676 = vmatpush1.bf16.msra.mxu0 0
        %1677 = vmatprep.subr.bf16.mxu0 0
        %1678 = vmatpush1.bf16.msra.mxu0 0
        %1679 = vmatprep.mubr.bf16.mxu0 0
        %1680 = vmatmul.mubr.bf16.gmra.mrb[0].mxu0 %v1642
        %v1681 = vpop.f32.mrb[0].mxu0
        %v1682 = vadd.f32 %v1317, %v1681
        %v1683 = vpop.f32.mrb[0].mxu0
        %v1684 = vpop.f32.mrb[0].mxu0
        %v1685 = vpop.f32.mrb[0].mxu0
        %1686 = vdwg.mxu0
        %v1687 = vmax.f32 %v1360, 0.0
        %v1688 = vmax.f32 %v1406, 0.0
        %v1689 = vmax.f32 %v1452, 0.0
        %v1690 = vmax.f32 %v1498, 0.0
        %v1691 = vmax.f32 %v1544, 0.0
        %v1692 = vmax.f32 %v1590, 0.0
        %v1693 = vmax.f32 %v1636, 0.0
        %v1694 = vmax.f32 %v1682, 0.0
        %1695 = vrot.lane.b32.xlu0 %v1687, 1
        %v1696 = vpop.permute.xlu0 %1695
        %1697 = vrot.lane.b32.xlu0 %v1688, 1
        %v1698 = vpop.permute.xlu0 %1697
        %1699 = vrot.lane.b32.xlu0 %v1689, 1
        %v1700 = vpop.permute.xlu0 %1699
        %1701 = vrot.lane.b32.xlu0 %v1690, 1
        %v1702 = vpop.permute.xlu0 %1701
        %1703 = vrot.lane.b32.xlu0 %v1691, 1
        %v1704 = vpop.permute.xlu0 %1703
        %1705 = vrot.lane.b32.xlu0 %v1692, 1
        %v1706 = vpop.permute.xlu0 %1705
        %1707 = vrot.lane.b32.xlu0 %v1693, 1
        %v1708 = vpop.permute.xlu0 %1707
        %1709 = vrot.lane.b32.xlu0 %v1694, 1
        %v1710 = vpop.permute.xlu0 %1709
        %v1711 = vsel %vm533, %v1696, 0.0
        %v1712 = vsel %vm533, %v1698, 0.0
        %v1713 = vsel %vm533, %v1700, 0.0
        %v1714 = vsel %vm533, %v1702, 0.0
        %v1715 = vsel %vm533, %v1704, 0.0
        %v1716 = vsel %vm533, %v1706, 0.0
        %v1717 = vsel %vm533, %v1708, 0.0
        %v1718 = vsel %vm533, %v1710, 0.0
        %1719 = vrot.lane.b32.xlu0 %v1687, 127
        %v1720 = vpop.permute.xlu0 %1719
        %1721 = vrot.lane.b32.xlu0 %v1688, 127
        %v1722 = vpop.permute.xlu0 %1721
        %1723 = vrot.lane.b32.xlu0 %v1689, 127
        %v1724 = vpop.permute.xlu0 %1723
        %1725 = vrot.lane.b32.xlu0 %v1690, 127
        %v1726 = vpop.permute.xlu0 %1725
        %1727 = vrot.lane.b32.xlu0 %v1691, 127
        %v1728 = vpop.permute.xlu0 %1727
        %1729 = vrot.lane.b32.xlu0 %v1692, 127
        %v1730 = vpop.permute.xlu0 %1729
        %1731 = vrot.lane.b32.xlu0 %v1693, 127
        %v1732 = vpop.permute.xlu0 %1731
        %1733 = vrot.lane.b32.xlu0 %v1694, 127
        %v1734 = vpop.permute.xlu0 %1733
        %v1735 = vsel %vm583, %v1720, 0.0
        %v1736 = vsel %vm583, %v1722, 0.0
        %v1737 = vsel %vm583, %v1724, 0.0
        %v1738 = vsel %vm583, %v1726, 0.0
        %v1739 = vsel %vm583, %v1728, 0.0
        %v1740 = vsel %vm583, %v1730, 0.0
        %v1741 = vsel %vm583, %v1732, 0.0
        %v1742 = vsel %vm583, %v1734, 0.0
        %v1743 = vpack.c.bf16 %v1687, %v1711
        %v1744 = vpack.c.bf16 %v1735, %v1735
        %v1745 = vpack.c.bf16 %v1688, %v1712
        %v1746 = vpack.c.bf16 %v1736, %v1736
        %v1747 = vpack.c.bf16 %v1689, %v1713
        %v1748 = vpack.c.bf16 %v1737, %v1737
        %v1749 = vpack.c.bf16 %v1690, %v1714
        %v1750 = vpack.c.bf16 %v1738, %v1738
        %v1751 = vpack.c.bf16 %v1691, %v1715
        %v1752 = vpack.c.bf16 %v1739, %v1739
        %v1753 = vpack.c.bf16 %v1692, %v1716
        %v1754 = vpack.c.bf16 %v1740, %v1740
        %v1755 = vpack.c.bf16 %v1693, %v1717
        %v1756 = vpack.c.bf16 %v1741, %v1741
        %v1757 = vpack.c.bf16 %v1694, %v1718
        %v1758 = vpack.c.bf16 %v1742, %v1742
        %v1759 = vld [vmem:[%s462] sm:$0x3]
        %v1760 = vld [vmem:[%s462 + $0x2] sm:$0x3]
        %v1761 = vld [vmem:[%s462 + $0x4] sm:$0x3]
        %v1762 = vld [vmem:[%s462 + $0x6] sm:$0x3]
        %v1763 = vld [vmem:[%s462 + $0x8] sm:$0x3]
        %v1764 = vld [vmem:[%s462 + $0xa] sm:$0x3]
        %v1765 = vld [vmem:[%s462 + $0xc] sm:$0x3]
        %v1766 = vld [vmem:[%s462 + $0xe] sm:$0x3]
        %v1767 = vld [vmem:[%s467] sm:$0xff]
        %v1768 = vlaneseq
        %v1769 = vshrl.u32 %v1768, 7
        %v1770 = vsub.s32 0, %v1769
        %v1771 = vrot.slane %v1767, %v1770
        %1773 = vbcast.lane.b32.xlu0 %v1771, 256
        %v1774 = vpop.permute.xlu0 %1773
        %v1775 = vlaneseq
        %v1776 = vshrl.u32 %v1775, 7
        %v1777 = vsub.s32 1, %v1776
        %v1778 = vrot.slane %v1767, %v1777
        %1780 = vbcast.lane.b32.xlu0 %v1778, 256
        %v1781 = vpop.permute.xlu0 %1780
        %v1782 = vlaneseq
        %v1783 = vshrl.u32 %v1782, 7
        %v1784 = vsub.s32 2, %v1783
        %v1785 = vrot.slane %v1767, %v1784
        %1787 = vbcast.lane.b32.xlu0 %v1785, 256
        %v1788 = vpop.permute.xlu0 %1787
        %v1789 = vlaneseq
        %v1790 = vshrl.u32 %v1789, 7
        %v1791 = vsub.s32 3, %v1790
        %v1792 = vrot.slane %v1767, %v1791
        %1794 = vbcast.lane.b32.xlu0 %v1792, 256
        %v1795 = vpop.permute.xlu0 %1794
        %v1796 = vlaneseq
        %v1797 = vshrl.u32 %v1796, 7
        %v1798 = vsub.s32 4, %v1797
        %v1799 = vrot.slane %v1767, %v1798
        %1801 = vbcast.lane.b32.xlu0 %v1799, 256
        %v1802 = vpop.permute.xlu0 %1801
        %v1803 = vlaneseq
        %v1804 = vshrl.u32 %v1803, 7
        %v1805 = vsub.s32 5, %v1804
        %v1806 = vrot.slane %v1767, %v1805
        %1808 = vbcast.lane.b32.xlu0 %v1806, 256
        %v1809 = vpop.permute.xlu0 %1808
        %v1810 = vlaneseq
        %v1811 = vshrl.u32 %v1810, 7
        %v1812 = vsub.s32 6, %v1811
        %v1813 = vrot.slane %v1767, %v1812
        %1815 = vbcast.lane.b32.xlu0 %v1813, 256
        %v1816 = vpop.permute.xlu0 %1815
        %v1817 = vlaneseq
        %v1818 = vshrl.u32 %v1817, 7
        %v1819 = vsub.s32 7, %v1818
        %v1820 = vrot.slane %v1767, %v1819
        %1822 = vbcast.lane.b32.xlu0 %v1820, 256
        %v1823 = vpop.permute.xlu0 %1822
        %v1825 = vsel %vm1318, %v1759, 0
        %v1828 = vsel %vm673, %v1744, 0
        %1830 = vmatprep.subr.bf16.mxu0 0
        %1831 = vmatpush1.bf16.msra.mxu0 %v1743
        %1832 = vmatprep.subr.bf16.mxu0 0
        %1833 = vmatpush1.bf16.msra.mxu0 %v1828
        %1834 = vmatprep.subr.bf16.mxu0 0
        %1835 = vmatpush1.bf16.msra.mxu0 0
        %1836 = vmatprep.subr.bf16.mxu0 0
        %1837 = vmatpush1.bf16.msra.mxu0 0
        %1838 = vmatprep.subr.bf16.mxu0 0
        %1839 = vmatpush1.bf16.msra.mxu0 0
        %1840 = vmatprep.subr.bf16.mxu0 0
        %1841 = vmatpush1.bf16.msra.mxu0 0
        %1842 = vmatprep.subr.bf16.mxu0 0
        %1843 = vmatpush1.bf16.msra.mxu0 0
        %1844 = vmatprep.subr.bf16.mxu0 0
        %1845 = vmatpush1.bf16.msra.mxu0 0
        %1846 = vmatprep.subr.bf16.mxu0 0
        %1847 = vmatpush1.bf16.msra.mxu0 0
        %1848 = vmatprep.subr.bf16.mxu0 0
        %1849 = vmatpush1.bf16.msra.mxu0 0
        %1850 = vmatprep.subr.bf16.mxu0 0
        %1851 = vmatpush1.bf16.msra.mxu0 0
        %1852 = vmatprep.subr.bf16.mxu0 0
        %1853 = vmatpush1.bf16.msra.mxu0 0
        %1854 = vmatprep.subr.bf16.mxu0 0
        %1855 = vmatpush1.bf16.msra.mxu0 0
        %1856 = vmatprep.subr.bf16.mxu0 0
        %1857 = vmatpush1.bf16.msra.mxu0 0
        %1858 = vmatprep.subr.bf16.mxu0 0
        %1859 = vmatpush1.bf16.msra.mxu0 0
        %1860 = vmatprep.subr.bf16.mxu0 0
        %1861 = vmatpush1.bf16.msra.mxu0 0
        %1862 = vmatprep.mubr.bf16.mxu0 0
        %1863 = vmatmul.mubr.bf16.gmra.mrb[0].mxu0 %v1825
        %v1864 = vpop.f32.mrb[0].mxu0
        %v1865 = vadd.f32 %v1774, %v1864
        %v1866 = vpop.f32.mrb[0].mxu0
        %v1867 = vpop.f32.mrb[0].mxu0
        %v1868 = vpop.f32.mrb[0].mxu0
        %1869 = vdwg.mxu0
        %v1871 = vsel %vm1318, %v1760, 0
        %v1874 = vsel %vm673, %v1746, 0
        %1876 = vmatprep.subr.bf16.mxu0 0
        %1877 = vmatpush1.bf16.msra.mxu0 %v1745
        %1878 = vmatprep.subr.bf16.mxu0 0
        %1879 = vmatpush1.bf16.msra.mxu0 %v1874
        %1880 = vmatprep.subr.bf16.mxu0 0
        %1881 = vmatpush1.bf16.msra.mxu0 0
        %1882 = vmatprep.subr.bf16.mxu0 0
        %1883 = vmatpush1.bf16.msra.mxu0 0
        %1884 = vmatprep.subr.bf16.mxu0 0
        %1885 = vmatpush1.bf16.msra.mxu0 0
        %1886 = vmatprep.subr.bf16.mxu0 0
        %1887 = vmatpush1.bf16.msra.mxu0 0
        %1888 = vmatprep.subr.bf16.mxu0 0
        %1889 = vmatpush1.bf16.msra.mxu0 0
        %1890 = vmatprep.subr.bf16.mxu0 0
        %1891 = vmatpush1.bf16.msra.mxu0 0
        %1892 = vmatprep.subr.bf16.mxu0 0
        %1893 = vmatpush1.bf16.msra.mxu0 0
        %1894 = vmatprep.subr.bf16.mxu0 0
        %1895 = vmatpush1.bf16.msra.mxu0 0
        %1896 = vmatprep.subr.bf16.mxu0 0
        %1897 = vmatpush1.bf16.msra.mxu0 0
        %1898 = vmatprep.subr.bf16.mxu0 0
        %1899 = vmatpush1.bf16.msra.mxu0 0
        %1900 = vmatprep.subr.bf16.mxu0 0
        %1901 = vmatpush1.bf16.msra.mxu0 0
        %1902 = vmatprep.subr.bf16.mxu0 0
        %1903 = vmatpush1.bf16.msra.mxu0 0
        %1904 = vmatprep.subr.bf16.mxu0 0
        %1905 = vmatpush1.bf16.msra.mxu0 0
        %1906 = vmatprep.subr.bf16.mxu0 0
        %1907 = vmatpush1.bf16.msra.mxu0 0
        %1908 = vmatprep.mubr.bf16.mxu0 0
        %1909 = vmatmul.mubr.bf16.gmra.mrb[0].mxu0 %v1871
        %v1910 = vpop.f32.mrb[0].mxu0
        %v1911 = vadd.f32 %v1781, %v1910
        %v1912 = vpop.f32.mrb[0].mxu0
        %v1913 = vpop.f32.mrb[0].mxu0
        %v1914 = vpop.f32.mrb[0].mxu0
        %1915 = vdwg.mxu0
        %v1917 = vsel %vm1318, %v1761, 0
        %v1920 = vsel %vm673, %v1748, 0
        %1922 = vmatprep.subr.bf16.mxu0 0
        %1923 = vmatpush1.bf16.msra.mxu0 %v1747
        %1924 = vmatprep.subr.bf16.mxu0 0
        %1925 = vmatpush1.bf16.msra.mxu0 %v1920
        %1926 = vmatprep.subr.bf16.mxu0 0
        %1927 = vmatpush1.bf16.msra.mxu0 0
        %1928 = vmatprep.subr.bf16.mxu0 0
        %1929 = vmatpush1.bf16.msra.mxu0 0
        %1930 = vmatprep.subr.bf16.mxu0 0
        %1931 = vmatpush1.bf16.msra.mxu0 0
        %1932 = vmatprep.subr.bf16.mxu0 0
        %1933 = vmatpush1.bf16.msra.mxu0 0
        %1934 = vmatprep.subr.bf16.mxu0 0
        %1935 = vmatpush1.bf16.msra.mxu0 0
        %1936 = vmatprep.subr.bf16.mxu0 0
        %1937 = vmatpush1.bf16.msra.mxu0 0
        %1938 = vmatprep.subr.bf16.mxu0 0
        %1939 = vmatpush1.bf16.msra.mxu0 0
        %1940 = vmatprep.subr.bf16.mxu0 0
        %1941 = vmatpush1.bf16.msra.mxu0 0
        %1942 = vmatprep.subr.bf16.mxu0 0
        %1943 = vmatpush1.bf16.msra.mxu0 0
        %1944 = vmatprep.subr.bf16.mxu0 0
        %1945 = vmatpush1.bf16.msra.mxu0 0
        %1946 = vmatprep.subr.bf16.mxu0 0
        %1947 = vmatpush1.bf16.msra.mxu0 0
        %1948 = vmatprep.subr.bf16.mxu0 0
        %1949 = vmatpush1.bf16.msra.mxu0 0
        %1950 = vmatprep.subr.bf16.mxu0 0
        %1951 = vmatpush1.bf16.msra.mxu0 0
        %1952 = vmatprep.subr.bf16.mxu0 0
        %1953 = vmatpush1.bf16.msra.mxu0 0
        %1954 = vmatprep.mubr.bf16.mxu0 0
        %1955 = vmatmul.mubr.bf16.gmra.mrb[0].mxu0 %v1917
        %v1956 = vpop.f32.mrb[0].mxu0
        %v1957 = vadd.f32 %v1788, %v1956
        %v1958 = vpop.f32.mrb[0].mxu0
        %v1959 = vpop.f32.mrb[0].mxu0
        %v1960 = vpop.f32.mrb[0].mxu0
        %1961 = vdwg.mxu0
        %v1963 = vsel %vm1318, %v1762, 0
        %v1966 = vsel %vm673, %v1750, 0
        %1968 = vmatprep.subr.bf16.mxu0 0
        %1969 = vmatpush1.bf16.msra.mxu0 %v1749
        %1970 = vmatprep.subr.bf16.mxu0 0
        %1971 = vmatpush1.bf16.msra.mxu0 %v1966
        %1972 = vmatprep.subr.bf16.mxu0 0
        %1973 = vmatpush1.bf16.msra.mxu0 0
        %1974 = vmatprep.subr.bf16.mxu0 0
        %1975 = vmatpush1.bf16.msra.mxu0 0
        %1976 = vmatprep.subr.bf16.mxu0 0
        %1977 = vmatpush1.bf16.msra.mxu0 0
        %1978 = vmatprep.subr.bf16.mxu0 0
        %1979 = vmatpush1.bf16.msra.mxu0 0
        %1980 = vmatprep.subr.bf16.mxu0 0
        %1981 = vmatpush1.bf16.msra.mxu0 0
        %1982 = vmatprep.subr.bf16.mxu0 0
        %1983 = vmatpush1.bf16.msra.mxu0 0
        %1984 = vmatprep.subr.bf16.mxu0 0
        %1985 = vmatpush1.bf16.msra.mxu0 0
        %1986 = vmatprep.subr.bf16.mxu0 0
        %1987 = vmatpush1.bf16.msra.mxu0 0
        %1988 = vmatprep.subr.bf16.mxu0 0
        %1989 = vmatpush1.bf16.msra.mxu0 0
        %1990 = vmatprep.subr.bf16.mxu0 0
        %1991 = vmatpush1.bf16.msra.mxu0 0
        %1992 = vmatprep.subr.bf16.mxu0 0
        %1993 = vmatpush1.bf16.msra.mxu0 0
        %1994 = vmatprep.subr.bf16.mxu0 0
        %1995 = vmatpush1.bf16.msra.mxu0 0
        %1996 = vmatprep.subr.bf16.mxu0 0
        %1997 = vmatpush1.bf16.msra.mxu0 0
        %1998 = vmatprep.subr.bf16.mxu0 0
        %1999 = vmatpush1.bf16.msra.mxu0 0
        %2000 = vmatprep.mubr.bf16.mxu0 0
        %2001 = vmatmul.mubr.bf16.gmra.mrb[0].mxu0 %v1963
        %v2002 = vpop.f32.mrb[0].mxu0
        %v2003 = vadd.f32 %v1795, %v2002
        %v2004 = vpop.f32.mrb[0].mxu0
        %v2005 = vpop.f32.mrb[0].mxu0
        %v2006 = vpop.f32.mrb[0].mxu0
        %2007 = vdwg.mxu0
        %v2009 = vsel %vm1318, %v1763, 0
        %v2012 = vsel %vm673, %v1752, 0
        %2014 = vmatprep.subr.bf16.mxu0 0
        %2015 = vmatpush1.bf16.msra.mxu0 %v1751
        %2016 = vmatprep.subr.bf16.mxu0 0
        %2017 = vmatpush1.bf16.msra.mxu0 %v2012
        %2018 = vmatprep.subr.bf16.mxu0 0
        %2019 = vmatpush1.bf16.msra.mxu0 0
        %2020 = vmatprep.subr.bf16.mxu0 0
        %2021 = vmatpush1.bf16.msra.mxu0 0
        %2022 = vmatprep.subr.bf16.mxu0 0
        %2023 = vmatpush1.bf16.msra.mxu0 0
        %2024 = vmatprep.subr.bf16.mxu0 0
        %2025 = vmatpush1.bf16.msra.mxu0 0
        %2026 = vmatprep.subr.bf16.mxu0 0
        %2027 = vmatpush1.bf16.msra.mxu0 0
        %2028 = vmatprep.subr.bf16.mxu0 0
        %2029 = vmatpush1.bf16.msra.mxu0 0
        %2030 = vmatprep.subr.bf16.mxu0 0
        %2031 = vmatpush1.bf16.msra.mxu0 0
        %2032 = vmatprep.subr.bf16.mxu0 0
        %2033 = vmatpush1.bf16.msra.mxu0 0
        %2034 = vmatprep.subr.bf16.mxu0 0
        %2035 = vmatpush1.bf16.msra.mxu0 0
        %2036 = vmatprep.subr.bf16.mxu0 0
        %2037 = vmatpush1.bf16.msra.mxu0 0
        %2038 = vmatprep.subr.bf16.mxu0 0
        %2039 = vmatpush1.bf16.msra.mxu0 0
        %2040 = vmatprep.subr.bf16.mxu0 0
        %2041 = vmatpush1.bf16.msra.mxu0 0
        %2042 = vmatprep.subr.bf16.mxu0 0
        %2043 = vmatpush1.bf16.msra.mxu0 0
        %2044 = vmatprep.subr.bf16.mxu0 0
        %2045 = vmatpush1.bf16.msra.mxu0 0
        %2046 = vmatprep.mubr.bf16.mxu0 0
        %2047 = vmatmul.mubr.bf16.gmra.mrb[0].mxu0 %v2009
        %v2048 = vpop.f32.mrb[0].mxu0
        %v2049 = vadd.f32 %v1802, %v2048
        %v2050 = vpop.f32.mrb[0].mxu0
        %v2051 = vpop.f32.mrb[0].mxu0
        %v2052 = vpop.f32.mrb[0].mxu0
        %2053 = vdwg.mxu0
        %v2055 = vsel %vm1318, %v1764, 0
        %v2058 = vsel %vm673, %v1754, 0
        %2060 = vmatprep.subr.bf16.mxu0 0
        %2061 = vmatpush1.bf16.msra.mxu0 %v1753
        %2062 = vmatprep.subr.bf16.mxu0 0
        %2063 = vmatpush1.bf16.msra.mxu0 %v2058
        %2064 = vmatprep.subr.bf16.mxu0 0
        %2065 = vmatpush1.bf16.msra.mxu0 0
        %2066 = vmatprep.subr.bf16.mxu0 0
        %2067 = vmatpush1.bf16.msra.mxu0 0
        %2068 = vmatprep.subr.bf16.mxu0 0
        %2069 = vmatpush1.bf16.msra.mxu0 0
        %2070 = vmatprep.subr.bf16.mxu0 0
        %2071 = vmatpush1.bf16.msra.mxu0 0
        %2072 = vmatprep.subr.bf16.mxu0 0
        %2073 = vmatpush1.bf16.msra.mxu0 0
        %2074 = vmatprep.subr.bf16.mxu0 0
        %2075 = vmatpush1.bf16.msra.mxu0 0
        %2076 = vmatprep.subr.bf16.mxu0 0
        %2077 = vmatpush1.bf16.msra.mxu0 0
        %2078 = vmatprep.subr.bf16.mxu0 0
        %2079 = vmatpush1.bf16.msra.mxu0 0
        %2080 = vmatprep.subr.bf16.mxu0 0
        %2081 = vmatpush1.bf16.msra.mxu0 0
        %2082 = vmatprep.subr.bf16.mxu0 0
        %2083 = vmatpush1.bf16.msra.mxu0 0
        %2084 = vmatprep.subr.bf16.mxu0 0
        %2085 = vmatpush1.bf16.msra.mxu0 0
        %2086 = vmatprep.subr.bf16.mxu0 0
        %2087 = vmatpush1.bf16.msra.mxu0 0
        %2088 = vmatprep.subr.bf16.mxu0 0
        %2089 = vmatpush1.bf16.msra.mxu0 0
        %2090 = vmatprep.subr.bf16.mxu0 0
        %2091 = vmatpush1.bf16.msra.mxu0 0
        %2092 = vmatprep.mubr.bf16.mxu0 0
        %2093 = vmatmul.mubr.bf16.gmra.mrb[0].mxu0 %v2055
        %v2094 = vpop.f32.mrb[0].mxu0
        %v2095 = vadd.f32 %v1809, %v2094
        %v2096 = vpop.f32.mrb[0].mxu0
        %v2097 = vpop.f32.mrb[0].mxu0
        %v2098 = vpop.f32.mrb[0].mxu0
        %2099 = vdwg.mxu0
        %v2101 = vsel %vm1318, %v1765, 0
        %v2104 = vsel %vm673, %v1756, 0
        %2106 = vmatprep.subr.bf16.mxu0 0
        %2107 = vmatpush1.bf16.msra.mxu0 %v1755
        %2108 = vmatprep.subr.bf16.mxu0 0
        %2109 = vmatpush1.bf16.msra.mxu0 %v2104
        %2110 = vmatprep.subr.bf16.mxu0 0
        %2111 = vmatpush1.bf16.msra.mxu0 0
        %2112 = vmatprep.subr.bf16.mxu0 0
        %2113 = vmatpush1.bf16.msra.mxu0 0
        %2114 = vmatprep.subr.bf16.mxu0 0
        %2115 = vmatpush1.bf16.msra.mxu0 0
        %2116 = vmatprep.subr.bf16.mxu0 0
        %2117 = vmatpush1.bf16.msra.mxu0 0
        %2118 = vmatprep.subr.bf16.mxu0 0
        %2119 = vmatpush1.bf16.msra.mxu0 0
        %2120 = vmatprep.subr.bf16.mxu0 0
        %2121 = vmatpush1.bf16.msra.mxu0 0
        %2122 = vmatprep.subr.bf16.mxu0 0
        %2123 = vmatpush1.bf16.msra.mxu0 0
        %2124 = vmatprep.subr.bf16.mxu0 0
        %2125 = vmatpush1.bf16.msra.mxu0 0
        %2126 = vmatprep.subr.bf16.mxu0 0
        %2127 = vmatpush1.bf16.msra.mxu0 0
        %2128 = vmatprep.subr.bf16.mxu0 0
        %2129 = vmatpush1.bf16.msra.mxu0 0
        %2130 = vmatprep.subr.bf16.mxu0 0
        %2131 = vmatpush1.bf16.msra.mxu0 0
        %2132 = vmatprep.subr.bf16.mxu0 0
        %2133 = vmatpush1.bf16.msra.mxu0 0
        %2134 = vmatprep.subr.bf16.mxu0 0
        %2135 = vmatpush1.bf16.msra.mxu0 0
        %2136 = vmatprep.subr.bf16.mxu0 0
        %2137 = vmatpush1.bf16.msra.mxu0 0
        %2138 = vmatprep.mubr.bf16.mxu0 0
        %2139 = vmatmul.mubr.bf16.gmra.mrb[0].mxu0 %v2101
        %v2140 = vpop.f32.mrb[0].mxu0
        %v2141 = vadd.f32 %v1816, %v2140
        %v2142 = vpop.f32.mrb[0].mxu0
        %v2143 = vpop.f32.mrb[0].mxu0
        %v2144 = vpop.f32.mrb[0].mxu0
        %2145 = vdwg.mxu0
        %v2147 = vsel %vm1318, %v1766, 0
        %v2150 = vsel %vm673, %v1758, 0
        %2152 = vmatprep.subr.bf16.mxu0 0
        %2153 = vmatpush1.bf16.msra.mxu0 %v1757
        %2154 = vmatprep.subr.bf16.mxu0 0
        %2155 = vmatpush1.bf16.msra.mxu0 %v2150
        %2156 = vmatprep.subr.bf16.mxu0 0
        %2157 = vmatpush1.bf16.msra.mxu0 0
        %2158 = vmatprep.subr.bf16.mxu0 0
        %2159 = vmatpush1.bf16.msra.mxu0 0
        %2160 = vmatprep.subr.bf16.mxu0 0
        %2161 = vmatpush1.bf16.msra.mxu0 0
        %2162 = vmatprep.subr.bf16.mxu0 0
        %2163 = vmatpush1.bf16.msra.mxu0 0
        %2164 = vmatprep.subr.bf16.mxu0 0
        %2165 = vmatpush1.bf16.msra.mxu0 0
        %2166 = vmatprep.subr.bf16.mxu0 0
        %2167 = vmatpush1.bf16.msra.mxu0 0
        %2168 = vmatprep.subr.bf16.mxu0 0
        %2169 = vmatpush1.bf16.msra.mxu0 0
        %2170 = vmatprep.subr.bf16.mxu0 0
        %2171 = vmatpush1.bf16.msra.mxu0 0
        %2172 = vmatprep.subr.bf16.mxu0 0
        %2173 = vmatpush1.bf16.msra.mxu0 0
        %2174 = vmatprep.subr.bf16.mxu0 0
        %2175 = vmatpush1.bf16.msra.mxu0 0
        %2176 = vmatprep.subr.bf16.mxu0 0
        %2177 = vmatpush1.bf16.msra.mxu0 0
        %2178 = vmatprep.subr.bf16.mxu0 0
        %2179 = vmatpush1.bf16.msra.mxu0 0
        %2180 = vmatprep.subr.bf16.mxu0 0
        %2181 = vmatpush1.bf16.msra.mxu0 0
        %2182 = vmatprep.subr.bf16.mxu0 0
        %2183 = vmatpush1.bf16.msra.mxu0 0
        %2184 = vmatprep.mubr.bf16.mxu0 0
        %2185 = vmatmul.mubr.bf16.gmra.mrb[0].mxu0 %v2147
        %v2186 = vpop.f32.mrb[0].mxu0
        %v2187 = vadd.f32 %v1823, %v2186
        %v2188 = vpop.f32.mrb[0].mxu0
        %v2189 = vpop.f32.mrb[0].mxu0
        %v2190 = vpop.f32.mrb[0].mxu0
        %2191 = vdwg.mxu0
        %v2192 = vld [vmem:[#allocation2] sm:$0xf]
        %v2193 = vsel %vm673, %v1865, 0.0
        %v2194 = vsel %vm673, %v1911, 0.0
        %v2195 = vadd.f32 %v2193, %v2194
        %v2196 = vsel %vm673, %v1957, 0.0
        %v2197 = vadd.f32 %v2195, %v2196
        %v2198 = vsel %vm673, %v2003, 0.0
        %v2199 = vadd.f32 %v2197, %v2198
        %v2200 = vsel %vm673, %v2049, 0.0
        %v2201 = vadd.f32 %v2199, %v2200
        %v2202 = vsel %vm673, %v2095, 0.0
        %v2203 = vadd.f32 %v2201, %v2202
        %v2204 = vsel %vm673, %v2141, 0.0
        %v2205 = vadd.f32 %v2203, %v2204
        %v2206 = vsel %vm673, %v2187, 0.0
        %v2207 = vadd.f32 %v2205, %v2206
        %v2208 = vadd.f32 %v2192, %v2207
        %2209 = vst [vmem:[#allocation2] sm:$0xf] %v2208
        %p2210 = scmp.eq.s32.totalorder %s27, 1
        // Predicated region
        $region57: #{tpu_custom_call.1} parent=51 // pred_check
          %p2211 = pneg %p2210
        $region58: #{tpu_custom_call.1} parent=51 // pred_check_branch
          %2213 = sbr.rel (%p2211) target = $region60
        $region59: #{tpu_custom_call.1} parent=51 // pred_region
          %v2214 = vld [vmem:[%s437] sm:$0xf]
          %v2215 = vld [vmem:[#allocation2] sm:$0xf]
          %v2216 = vmul.f32 %v2214, %v2215
          %v2217 = vadd.f32 %v2216, 1.0
          %v2218 = vlog2.pop %v2217
          %v2219 = vmul.f32 %v2218, 0.6931472
          %v2220 = vsel %vm673, %v2219, 0.0
          %v2221 = vrot.slane %v2220, 4
          %v2222 = vadd.f32 %v2220, %v2221
          %v2223 = vrot.slane %v2222, 2
          %v2224 = vadd.f32 %v2222, %v2223
          %v2225 = vrot.slane %v2224, 1
          %v2226 = vadd.f32 %v2224, %v2225
          %2227 = vst [vmem:[%s422] sm:$0x1] %v2226
        $region60: #{tpu_custom_call.1} parent=51 // pred_fallthru
          _
        %s2228 = sand.u32 %s252, 1
        %s2229 = scalar_lea.sflag [#allocation4], %s2228
        %s2230 = sand.u32 %s252, 1
        %s2231 = scalar_lea.vmem [#allocation3], %s2230
        // Predicated region
        $region61: #{tpu_custom_call.1} parent=51 // pred_check
          %p2232 = pneg %p262
        $region62: #{tpu_custom_call.1} parent=51 // pred_check_branch
          %2234 = sbr.rel (%p2232) target = $region64
        $region63: #{tpu_custom_call.1} parent=51 // pred_region
          %s2236 = ssub.s32 16, 16
          %2237 = vsyncadd %s2229, %s2236
          %s2238 = smul.addr %s26, 16
          %s2239 = scalar_lea.hbm %s8, %s2238
          %s2241 = sshll.u32 %s2231, 4
          %s2242 = int_to_ptr.vmem [resolvable:$true] %s2241
          %2244 = dma.vmem_to_hbm [thread:$0]  %s2242, 16, %s2239, %s2229
        $region64: #{tpu_custom_call.1} parent=51 // pred_fallthru
          _
      $region52: #{tpu_custom_call.1} parent=5 // pred_fallthru
        _
      %p2245 = scmp.le.s32.totalorder 2, %s17
      // Predicated region
      $region65: #{tpu_custom_call.1} parent=5 // pred_check
        %p2246 = pneg %p2245
      $region66: #{tpu_custom_call.1} parent=5 // pred_check_branch
        %2248 = sbr.rel (%p2246) target = $region68
      $region67: #{tpu_custom_call.1} parent=5 // pred_region
        %s2249 = ssub.s32 %s17, 2
        // Predicated region
        $region69: #{tpu_custom_call.1} parent=67 // pred_check
          %p2250 = pneg %p268
        $region70: #{tpu_custom_call.1} parent=67 // pred_check_branch
          %2252 = sbr.rel (%p2250) target = $region72
        $region71: #{tpu_custom_call.1} parent=67 // pred_region
          %s2253 = sand.u32 %s253, 1
          %s2254 = scalar_lea.sflag [#allocation4], %s2253
          %s2255 = sand.u32 %s253, 1
          %s2256 = scalar_lea.vmem [#allocation3], %s2255
          %2257 = dma.done %s2254, 16
        $region72: #{tpu_custom_call.1} parent=67 // pred_fallthru
          _
      $region68: #{tpu_custom_call.1} parent=5 // pred_fallthru
        _
    $region6: #{tpu_custom_call.1} parent=1 // loop_footer
      %s21 = sadd.s32 1, %s17
    $region7: #{tpu_custom_call.1} parent=1 // loop_footer_branch
      %16 = sbr.rel target = $region3
    $region8: #{tpu_custom_call.1} parent=1 // loop_exit
      _
    %2258 = vsyncpa [#allocation4], 1
    %s2259 = scalar_lea.sflag [#allocation4], 1
    %2260 = vsyncpa %s2259, 1

</llo_original>
